<compile_context>
chip_gen: v6e
topology: v6e:2x2x1
jax: 0.10.0
libtpu: 0.0.40
codegen_flags: <defaults>
</compile_context>

<pallas_src>
import functools

import jax
import jax.numpy as jnp
from jax.experimental import pallas as pl
from jax.experimental.pallas import tpu as pltpu


def _round_up(x, m):
    return ((x + m - 1) // m) * m


# ---------------------------------------------------------------------------
# auto_dis kernel (per-feature bucketized embedding), Ft features per grid step
# ---------------------------------------------------------------------------
def _autodis_kernel(x_ref, w1s_ref, b1_ref, w2_ref, b2_ref, tau_ref, emb_ref,
                    o_ref, *, ft, d):
    # Block shapes (Ft = features in this block, Bp = padded batch):
    #   x_ref   (Ft, Bp, 1)     w1s_ref (Ft, 1, L0)   b1_ref (Ft, 1, L0)
    #   w2_ref  (Ft, L0, N)     b2_ref  (Ft, 1, N)    tau_ref (Ft, 1, N)
    #   emb_ref (Ft, N, D)      o_ref   (Bp, Ft*D)
    x = x_ref[...]                                      # (Ft, Bp, 1)

    # Input sanitation (matches torch forward: nan->0, >65536 -> 65536, <0 -> 0).
    x = jnp.where(jnp.isnan(x), 0.0, x)
    x = jnp.minimum(x, 65536.0)
    x = jnp.maximum(x, 0.0)

    # expand(3) @ W1 == x * colsum(W1): pure VPU broadcast multiply-add.
    h1 = x * w1s_ref[...] + b1_ref[...]                 # (Ft, Bp, L0)
    h1 = jnp.where(h1 > 0, h1, 0.01 * h1)               # LeakyReLU(0.01)

    # linear2 (batched over the Ft features) + LeakyReLU + temperature.
    h2 = jax.lax.dot_general(
        h1, w2_ref[...],
        dimension_numbers=(((2,), (1,)), ((0,), (0,))),
        preferred_element_type=jnp.float32)             # (Ft, Bp, N)
    h2 = h2 + b2_ref[...]
    h2 = jnp.where(h2 > 0, h2, 0.01 * h2)
    h2 = h2 * tau_ref[...]

    # softmax over the bucket axis (reciprocal on the EUP).
    m = jnp.max(h2, axis=-1, keepdims=True)
    e = jnp.exp(h2 - m)
    s = e * pl.reciprocal(jnp.sum(e, axis=-1, keepdims=True), approx=True)

    # weighted sum of bucket embeddings, written lane-dense into [Bp, Ft*D].
    for fl in range(ft):
        of = jnp.dot(s[fl], emb_ref[fl],
                     preferred_element_type=jnp.float32)  # (Bp, D)
        o_ref[:, fl * d:(fl + 1) * d] = of.astype(o_ref.dtype)


def _choose_feature_block(F, D):
    """Pick Ft (multiple of 8) so the output block Ft*D is lane-dense (%128)."""
    ft = 8
    while ft < F and (ft * D) % 128 != 0:
        ft += 8
    if (ft * D) % 128 != 0:
        ft = _round_up(F, 8)          # single feature block == full output width
    return min(ft, _round_up(F, 8))


def autodis_forward(x, params):
    """x: [B, F] float32  ->  [B, F * bucket_dim]."""
    B, F = x.shape
    w1 = params["linear1_w"]          # [F, 3, L0]
    b1 = params["linear1_b"]          # [F, 1, L0]
    w2 = params["linear2_w"]          # [F, L0, N]
    b2 = params["linear2_b"]          # [F, 1, N]
    tau = params["tau"]               # [F, 1, N]
    emb = params["emb"]               # [F, N, D]
    L0 = w1.shape[-1]
    N = w2.shape[-1]
    D = emb.shape[-1]

    # x.expand(..., 3) @ W1 == x * W1.sum(axis=1): precompute the column sum.
    w1s = jnp.sum(w1, axis=1, keepdims=True)            # [F, 1, L0]

    Ft = _choose_feature_block(F, D)
    F_pad = _round_up(F, Ft)
    B_pad = _round_up(B, 8)

    # Feature-major input with padded batch (tiny tensor: B*F*4 bytes).
    xt = jnp.transpose(x).reshape(F, B, 1)
    xt = jnp.pad(xt, ((0, F_pad - F), (0, B_pad - B), (0, 0)))

    def pad_f(a, cval=0.0):
        return jnp.pad(a, ((0, F_pad - F),) + ((0, 0),) * (a.ndim - 1),
                       constant_values=cval)

    w1s_p = pad_f(w1s)
    b1_p = pad_f(b1)
    w2_p = pad_f(w2)
    b2_p = pad_f(b2)
    tau_p = pad_f(tau, 1.0)
    emb_p = pad_f(emb)

    out = pl.pallas_call(
        functools.partial(_autodis_kernel, ft=Ft, d=D),
        out_shape=jax.ShapeDtypeStruct((B_pad, F_pad * D), jnp.float32),
        grid_spec=pltpu.PrefetchScalarGridSpec(
            num_scalar_prefetch=0,
            grid=(F_pad // Ft,),
            in_specs=[
                pl.BlockSpec((Ft, B_pad, 1), lambda f: (f, 0, 0)),
                pl.BlockSpec((Ft, 1, L0), lambda f: (f, 0, 0)),
                pl.BlockSpec((Ft, 1, L0), lambda f: (f, 0, 0)),
                pl.BlockSpec((Ft, L0, N), lambda f: (f, 0, 0)),
                pl.BlockSpec((Ft, 1, N), lambda f: (f, 0, 0)),
                pl.BlockSpec((Ft, 1, N), lambda f: (f, 0, 0)),
                pl.BlockSpec((Ft, N, D), lambda f: (f, 0, 0)),
            ],
            out_specs=pl.BlockSpec((B_pad, Ft * D), lambda f: (0, f)),
        ),
        compiler_params=pltpu.CompilerParams(
            dimension_semantics=("parallel",),
            vmem_limit_bytes=32 * 1024 * 1024,
        ),
    )(xt, w1s_p, b1_p, w2_p, b2_p, tau_p, emb_p)

    return out[:B, :F * D]


# ---------------------------------------------------------------------------
# Tiled Linear (+ optional ReLU): canonical (M, N, K) blocked matmul
# ---------------------------------------------------------------------------
def _linear_kernel(x_ref, w_ref, b_ref, o_ref, acc_ref, *, activation):
    @pl.when(pl.program_id(2) == 0)
    def _():
        acc_ref[...] = jnp.zeros_like(acc_ref)

    acc_ref[...] += jnp.dot(x_ref[...], w_ref[...],
                            preferred_element_type=jnp.float32)

    @pl.when(pl.program_id(2) == pl.num_programs(2) - 1)
    def _():
        r = acc_ref[...] + b_ref[...]
        if activation == "relu":
            r = jnp.maximum(r, 0.0)
        o_ref[...] = r.astype(o_ref.dtype)


def linear_pallas(x, w, b, *, activation=None, out_dtype=jnp.float32,
                  matmul_dtype=None, tm=128, tn=256, tk=512):
    """x: [M, K], w: [K, N], b: [N]  ->  activation(x @ w + b): [M, N]."""
    M, K = x.shape
    K2, N = w.shape
    assert K == K2, (K, K2)

    # Tile sizes: fit under a 48 MiB scoped-VMEM budget (safe on v7x's 64 MiB),
    # lane dims multiples of 128, sublane multiples of 8.
    tm = min(tm, _round_up(M, 8))
    tn = min(tn, _round_up(N, 128))
    tk = min(tk, _round_up(K, 128))
    Mp, Kp, Np = _round_up(M, tm), _round_up(K, tk), _round_up(N, tn)

    xd = x if matmul_dtype is None else x.astype(matmul_dtype)
    wd = w if matmul_dtype is None else w.astype(matmul_dtype)
    xp = jnp.pad(xd, ((0, Mp - M), (0, Kp - K)))
    wp = jnp.pad(wd, ((0, Kp - K), (0, Np - N)))
    bp = jnp.pad(b.reshape(1, N).astype(jnp.float32), ((0, 0), (0, Np - N)))

    flops = 2 * Mp * Kp * Np
    bytes_accessed = (xp.size * xp.dtype.itemsize + wp.size * wp.dtype.itemsize
                      + bp.size * 4 + Mp * Np * jnp.dtype(out_dtype).itemsize)

    out = pl.pallas_call(
        functools.partial(_linear_kernel, activation=activation),
        out_shape=jax.ShapeDtypeStruct((Mp, Np), out_dtype),
        grid_spec=pltpu.PrefetchScalarGridSpec(
            num_scalar_prefetch=0,
            grid=(Mp // tm, Np // tn, Kp // tk),
            in_specs=[
                pl.BlockSpec((tm, tk), lambda i, j, k: (i, k)),
                pl.BlockSpec((tk, tn), lambda i, j, k: (k, j)),
                pl.BlockSpec((1, tn), lambda i, j, k: (0, j)),
            ],
            out_specs=pl.BlockSpec((tm, tn), lambda i, j, k: (i, j)),
            scratch_shapes=[pltpu.VMEM((tm, tn), jnp.float32)],
        ),
        compiler_params=pltpu.CompilerParams(
            dimension_semantics=("parallel", "parallel", "arbitrary"),
            vmem_limit_bytes=48 * 1024 * 1024,
        ),
        cost_estimate=pl.CostEstimate(flops=flops, transcendentals=0,
                                      bytes_accessed=bytes_accessed),
    )(xp, wp, bp)
    return out[:M, :N]


# ---------------------------------------------------------------------------
# full model
# ---------------------------------------------------------------------------
def video_gandalf_forward(stat_features, params):
    # self.layer and self.fc are nn.Identity for default add_block=False / use_fc=False.
    xf = autodis_forward(stat_features, params)                     # [B, F*D]
    h = linear_pallas(xf, params["proj1_w"], params["proj1_b"],
                      activation="relu")                            # [B, 256]
    return linear_pallas(h, params["proj2_w"], params["proj2_b"],
                         activation=None)                           # [B, llm_dim]
    # (set matmul_dtype=jnp.bfloat16 in both calls for the bf16-MXU fast path
    #  with f32 accumulation; default kept f32 to match module numerics.)


# ---------------------------------------------------------------------------
# deterministic parameter init (shapes follow Video_Gandalf_Model_V1.__init__)
# ---------------------------------------------------------------------------
def init_params(key, *, features, layer_conf, bucket_num, bucket_dim,
                llm_dim, proj_hidden=256):
    F = features
    L0, Ll = layer_conf[0], layer_conf[-1]
    ks = jax.random.split(key, 10)

    def kaiming_uniform(k, shape):
        fan_in = 1
        for s in shape[1:]:
            fan_in *= s
        bound = (2.0 ** 0.5) * (3.0 / fan_in) ** 0.5
        return jax.random.uniform(k, shape, jnp.float32, -bound, bound)

    def linear_init(kw, kb, in_dim, out_dim):
        bound = (1.0 / in_dim) ** 0.5
        w = jax.random.uniform(kw, (in_dim, out_dim), jnp.float32, -bound, bound)
        b = jax.random.uniform(kb, (out_dim,), jnp.float32, -bound, bound)
        return w, b

    p1w, p1b = linear_init(ks[6], ks[7], F * bucket_dim, proj_hidden)
    p2w, p2b = linear_init(ks[8], ks[9], proj_hidden, llm_dim)

    return {
        "linear1_w": kaiming_uniform(ks[0], (F, 3, L0)),
        "linear1_b": jax.random.normal(ks[1], (F, 1, L0), jnp.float32),
        "linear2_w": kaiming_uniform(ks[2], (F, Ll, bucket_num)),
        "linear2_b": jax.random.normal(ks[3], (F, 1, bucket_num), jnp.float32),
        "emb": jax.random.normal(ks[4], (F, bucket_num, bucket_dim), jnp.float32),
        "tau": jnp.ones((F, 1, bucket_num), jnp.float32),
        "proj1_w": p1w, "proj1_b": p1b,
        "proj2_w": p2w, "proj2_b": p2b,
    }
    # TODO(synk): ResBlock stack (add_block=True) and use_fc=True branch are nn.Identity
    # with the default constructor args and are therefore not instantiated here.


if __name__ == "__main__":
    # Small shapes consistent with the module defaults (scaled down).
    B = 2
    FEATURES = 8
    LAYER_CONF = [32, 32, 32]
    BUCKET_NUM = 8
    BUCKET_DIM = 16
    PROJ_HIDDEN = 256       # fixed to 256 in the torch module's proj Sequential
    LLM_DIM = 128

    key = jax.random.PRNGKey(0)
    k_params, k_x = jax.random.split(key)

    params = init_params(
        k_params, features=FEATURES, layer_conf=LAYER_CONF,
        bucket_num=BUCKET_NUM, bucket_dim=BUCKET_DIM,
        llm_dim=LLM_DIM, proj_hidden=PROJ_HIDDEN)

    stat_features = jax.random.normal(k_x, (B, FEATURES), jnp.float32) * 10.0
    # exercise the sanitation path: a NaN, an overflow value, a negative value
    stat_features = stat_features.at[0, 0].set(jnp.nan)
    stat_features = stat_features.at[0, 1].set(1.0e7)
    stat_features = stat_features.at[1, 0].set(-5.0)

    out = jax.jit(video_gandalf_forward)(stat_features, params)
    out = jax.block_until_ready(out)
    assert out.shape == (B, LLM_DIM), out.shape
    assert bool(jnp.all(jnp.isfinite(out)))
    print("KERNEL_OK")
</pallas_src>

<mosaic_0001>
module attributes {stable_mosaic.version = 11 : i64} {
  func.func @_linear_kernel(%arg0: i32, %arg1: i32, %arg2: i32, %arg3: memref<8x128xf32, #tpu.memory_space<vmem>>, %arg4: memref<128x256xf32, #tpu.memory_space<vmem>>, %arg5: memref<1x256xf32, #tpu.memory_space<vmem>>, %arg6: memref<8x256xf32, #tpu.memory_space<vmem>>, %arg7: memref<8x256xf32, #tpu.memory_space<vmem>>) attributes {dimension_semantics = [#tpu.dimension_semantics<parallel>, #tpu.dimension_semantics<parallel>, #tpu.dimension_semantics<arbitrary>], iteration_bounds = array<i64: 1, 1, 1>, scalar_prefetch = 0 : i64, scratch_operands = 1 : i64, tpu.core_type = #tpu.core_type<tc>, window_params = [{transform_indices = @transform_0, window_bounds = array<i64: 8, 128>}, {transform_indices = @transform_1, window_bounds = array<i64: 128, 256>}, {transform_indices = @transform_2, window_bounds = array<i64: 1, 256>}, {transform_indices = @transform_3, window_bounds = array<i64: 8, 256>}]} {
    %c0_i32 = arith.constant 0 : i32
    %0 = arith.cmpi eq, %arg2, %c0_i32 : i32
    %1 = arith.extui %0 : i1 to i32
    %c0_i32_0 = arith.constant 0 : i32
    %2 = arith.cmpi ne, %1, %c0_i32_0 : i32
    scf.if %2 {
      %cst_10 = arith.constant 0.000000e+00 : f32
      %12 = vector.broadcast %cst_10 : f32 to vector<8x256xf32>
      %c0_11 = arith.constant 0 : index
      %c0_12 = arith.constant 0 : index
      %13 = vector.load %arg7[%c0_11, %c0_12] : memref<8x256xf32, #tpu.memory_space<vmem>>, vector<8x256xf32>
      tpu.vector_store %arg7[%c0_11, %c0_12], %12 {strides = array<i32>} : memref<8x256xf32, #tpu.memory_space<vmem>>, vector<8x256xf32>,
    } else {
    }
    %c0 = arith.constant 0 : index
    %c0_1 = arith.constant 0 : index
    %3 = vector.load %arg7[%c0, %c0_1] : memref<8x256xf32, #tpu.memory_space<vmem>>, vector<8x256xf32>
    %c0_2 = arith.constant 0 : index
    %c0_3 = arith.constant 0 : index
    %4 = vector.load %arg3[%c0_2, %c0_3] : memref<8x128xf32, #tpu.memory_space<vmem>>, vector<8x128xf32>
    %c0_4 = arith.constant 0 : index
    %c0_5 = arith.constant 0 : index
    %5 = vector.load %arg4[%c0_4, %c0_5] : memref<128x256xf32, #tpu.memory_space<vmem>>, vector<128x256xf32>
    %cst = arith.constant dense<0.000000e+00> : vector<8x256xf32>
    %6 = tpu.matmul %4, %5, %cst {dimension_numbers = #tpu.dot_dimension_numbers<[1], [0], [0], [1], [0, 0, 1, 1], [], []>} : vector<8x128xf32>, vector<128x256xf32>, vector<8x256xf32> -> vector<8x256xf32>
    %7 = arith.addf %3, %6 : vector<8x256xf32>
    %c0_6 = arith.constant 0 : index
    %c0_7 = arith.constant 0 : index
    %8 = vector.load %arg7[%c0_6, %c0_7] : memref<8x256xf32, #tpu.memory_space<vmem>>, vector<8x256xf32>
    tpu.vector_store %arg7[%c0_6, %c0_7], %7 {strides = array<i32>} : memref<8x256xf32, #tpu.memory_space<vmem>>, vector<8x256xf32>,
    %c0_i32_8 = arith.constant 0 : i32
    %9 = arith.cmpi eq, %arg2, %c0_i32_8 : i32
    %10 = arith.extui %9 : i1 to i32
    %c0_i32_9 = arith.constant 0 : i32
    %11 = arith.cmpi ne, %10, %c0_i32_9 : i32
    scf.if %11 {
      %c0_10 = arith.constant 0 : index
      %c0_11 = arith.constant 0 : index
      %12 = vector.load %arg7[%c0_10, %c0_11] : memref<8x256xf32, #tpu.memory_space<vmem>>, vector<8x256xf32>
      %c0_12 = arith.constant 0 : index
      %c0_13 = arith.constant 0 : index
      %13 = vector.load %arg5[%c0_12, %c0_13] : memref<1x256xf32, #tpu.memory_space<vmem>>, vector<1x256xf32>
      %14 = vector.broadcast %13 : vector<1x256xf32> to vector<8x256xf32>
      %15 = arith.addf %12, %14 : vector<8x256xf32>
      %cst_14 = arith.constant 0.000000e+00 : f32
      %16 = vector.broadcast %cst_14 : f32 to vector<8x256xf32>
      %17 = arith.maximumf %15, %16 : vector<8x256xf32>
      %c0_15 = arith.constant 0 : index
      %c0_16 = arith.constant 0 : index
      %18 = vector.load %arg6[%c0_15, %c0_16] : memref<8x256xf32, #tpu.memory_space<vmem>>, vector<8x256xf32>
      tpu.vector_store %arg6[%c0_15, %c0_16], %17 {strides = array<i32>} : memref<8x256xf32, #tpu.memory_space<vmem>>, vector<8x256xf32>,
    } else {
    }
    return
  }
  func.func @transform_0(%arg0: i32, %arg1: i32, %arg2: i32) -> (i32, i32) {
    %c0_i32 = arith.constant 0 : i32
    return %arg0, %arg2 : i32, i32
  }
  func.func @transform_1(%arg0: i32, %arg1: i32, %arg2: i32) -> (i32, i32) {
    %c0_i32 = arith.constant 0 : i32
    return %arg2, %arg1 : i32, i32
  }
  func.func @transform_2(%arg0: i32, %arg1: i32, %arg2: i32) -> (i32, i32) {
    %c0_i32 = arith.constant 0 : i32
    %c0_i32_0 = arith.constant 0 : i32
    return %c0_i32, %arg1 : i32, i32
  }
  func.func @transform_3(%arg0: i32, %arg1: i32, %arg2: i32) -> (i32, i32) {
    %c0_i32 = arith.constant 0 : i32
    return %arg0, %arg1 : i32, i32
  }
}

module attributes {stable_mosaic.version = 11 : i64} {
  func.func @_linear_kernel(%arg0: i32, %arg1: i32, %arg2: i32, %arg3: memref<8x256xf32, #tpu.memory_space<vmem>>, %arg4: memref<256x128xf32, #tpu.memory_space<vmem>>, %arg5: memref<1x128xf32, #tpu.memory_space<vmem>>, %arg6: memref<8x128xf32, #tpu.memory_space<vmem>>, %arg7: memref<8x128xf32, #tpu.memory_space<vmem>>) attributes {dimension_semantics = [#tpu.dimension_semantics<parallel>, #tpu.dimension_semantics<parallel>, #tpu.dimension_semantics<arbitrary>], iteration_bounds = array<i64: 1, 1, 1>, scalar_prefetch = 0 : i64, scratch_operands = 1 : i64, tpu.core_type = #tpu.core_type<tc>, window_params = [{transform_indices = @transform_0, window_bounds = array<i64: 8, 256>}, {transform_indices = @transform_1, window_bounds = array<i64: 256, 128>}, {transform_indices = @transform_2, window_bounds = array<i64: 1, 128>}, {transform_indices = @transform_3, window_bounds = array<i64: 8, 128>}]} {
    %c0_i32 = arith.constant 0 : i32
    %0 = arith.cmpi eq, %arg2, %c0_i32 : i32
    %1 = arith.extui %0 : i1 to i32
    %c0_i32_0 = arith.constant 0 : i32
    %2 = arith.cmpi ne, %1, %c0_i32_0 : i32
    scf.if %2 {
      %cst_10 = arith.constant 0.000000e+00 : f32
      %12 = vector.broadcast %cst_10 : f32 to vector<8x128xf32>
      %c0_11 = arith.constant 0 : index
      %c0_12 = arith.constant 0 : index
      %13 = vector.load %arg7[%c0_11, %c0_12] : memref<8x128xf32, #tpu.memory_space<vmem>>, vector<8x128xf32>
      tpu.vector_store %arg7[%c0_11, %c0_12], %12 {strides = array<i32>} : memref<8x128xf32, #tpu.memory_space<vmem>>, vector<8x128xf32>,
    } else {
    }
    %c0 = arith.constant 0 : index
    %c0_1 = arith.constant 0 : index
    %3 = vector.load %arg7[%c0, %c0_1] : memref<8x128xf32, #tpu.memory_space<vmem>>, vector<8x128xf32>
    %c0_2 = arith.constant 0 : index
    %c0_3 = arith.constant 0 : index
    %4 = vector.load %arg3[%c0_2, %c0_3] : memref<8x256xf32, #tpu.memory_space<vmem>>, vector<8x256xf32>
    %c0_4 = arith.constant 0 : index
    %c0_5 = arith.constant 0 : index
    %5 = vector.load %arg4[%c0_4, %c0_5] : memref<256x128xf32, #tpu.memory_space<vmem>>, vector<256x128xf32>
    %cst = arith.constant dense<0.000000e+00> : vector<8x128xf32>
    %6 = tpu.matmul %4, %5, %cst {dimension_numbers = #tpu.dot_dimension_numbers<[1], [0], [0], [1], [0, 0, 1, 1], [], []>} : vector<8x256xf32>, vector<256x128xf32>, vector<8x128xf32> -> vector<8x128xf32>
    %7 = arith.addf %3, %6 : vector<8x128xf32>
    %c0_6 = arith.constant 0 : index
    %c0_7 = arith.constant 0 : index
    %8 = vector.load %arg7[%c0_6, %c0_7] : memref<8x128xf32, #tpu.memory_space<vmem>>, vector<8x128xf32>
    tpu.vector_store %arg7[%c0_6, %c0_7], %7 {strides = array<i32>} : memref<8x128xf32, #tpu.memory_space<vmem>>, vector<8x128xf32>,
    %c0_i32_8 = arith.constant 0 : i32
    %9 = arith.cmpi eq, %arg2, %c0_i32_8 : i32
    %10 = arith.extui %9 : i1 to i32
    %c0_i32_9 = arith.constant 0 : i32
    %11 = arith.cmpi ne, %10, %c0_i32_9 : i32
    scf.if %11 {
      %c0_10 = arith.constant 0 : index
      %c0_11 = arith.constant 0 : index
      %12 = vector.load %arg7[%c0_10, %c0_11] : memref<8x128xf32, #tpu.memory_space<vmem>>, vector<8x128xf32>
      %c0_12 = arith.constant 0 : index
      %c0_13 = arith.constant 0 : index
      %13 = vector.load %arg5[%c0_12, %c0_13] : memref<1x128xf32, #tpu.memory_space<vmem>>, vector<1x128xf32>
      %14 = vector.broadcast %13 : vector<1x128xf32> to vector<8x128xf32>
      %15 = arith.addf %12, %14 : vector<8x128xf32>
      %c0_14 = arith.constant 0 : index
      %c0_15 = arith.constant 0 : index
      %16 = vector.load %arg6[%c0_14, %c0_15] : memref<8x128xf32, #tpu.memory_space<vmem>>, vector<8x128xf32>
      tpu.vector_store %arg6[%c0_14, %c0_15], %15 {strides = array<i32>} : memref<8x128xf32, #tpu.memory_space<vmem>>, vector<8x128xf32>,
    } else {
    }
    return
  }
  func.func @transform_0(%arg0: i32, %arg1: i32, %arg2: i32) -> (i32, i32) {
    %c0_i32 = arith.constant 0 : i32
    return %arg0, %arg2 : i32, i32
  }
  func.func @transform_1(%arg0: i32, %arg1: i32, %arg2: i32) -> (i32, i32) {
    %c0_i32 = arith.constant 0 : i32
    return %arg2, %arg1 : i32, i32
  }
  func.func @transform_2(%arg0: i32, %arg1: i32, %arg2: i32) -> (i32, i32) {
    %c0_i32 = arith.constant 0 : i32
    %c0_i32_0 = arith.constant 0 : i32
    return %c0_i32, %arg1 : i32, i32
  }
  func.func @transform_3(%arg0: i32, %arg1: i32, %arg2: i32) -> (i32, i32) {
    %c0_i32 = arith.constant 0 : i32
    return %arg0, %arg1 : i32, i32
  }
}

module attributes {stable_mosaic.version = 11 : i64} {
  func.func @_autodis_kernel(%arg0: i32, %arg1: memref<8x8x1xf32, #tpu.memory_space<vmem>>, %arg2: memref<8x1x32xf32, #tpu.memory_space<vmem>>, %arg3: memref<8x1x32xf32, #tpu.memory_space<vmem>>, %arg4: memref<8x32x8xf32, #tpu.memory_space<vmem>>, %arg5: memref<8x1x8xf32, #tpu.memory_space<vmem>>, %arg6: memref<8x1x8xf32, #tpu.memory_space<vmem>>, %arg7: memref<8x8x16xf32, #tpu.memory_space<vmem>>, %arg8: memref<8x128xf32, #tpu.memory_space<vmem>>) attributes {dimension_semantics = [#tpu.dimension_semantics<parallel>], iteration_bounds = array<i64: 1>, scalar_prefetch = 0 : i64, scratch_operands = 0 : i64, tpu.core_type = #tpu.core_type<tc>, window_params = [{transform_indices = @transform_0, window_bounds = array<i64: 8, 8, 1>}, {transform_indices = @transform_1, window_bounds = array<i64: 8, 1, 32>}, {transform_indices = @transform_2, window_bounds = array<i64: 8, 1, 32>}, {transform_indices = @transform_3, window_bounds = array<i64: 8, 32, 8>}, {transform_indices = @transform_4, window_bounds = array<i64: 8, 1, 8>}, {transform_indices = @transform_5, window_bounds = array<i64: 8, 1, 8>}, {transform_indices = @transform_6, window_bounds = array<i64: 8, 8, 16>}, {transform_indices = @transform_7, window_bounds = array<i64: 8, 128>}]} {
    %c0 = arith.constant 0 : index
    %c0_0 = arith.constant 0 : index
    %c0_1 = arith.constant 0 : index
    %0 = vector.load %arg1[%c0, %c0_0, %c0_1] : memref<8x8x1xf32, #tpu.memory_space<vmem>>, vector<8x8x1xf32>
    %1 = arith.cmpf one, %0, %0 : vector<8x8x1xf32>
    %cst = arith.constant 0.000000e+00 : f32
    %2 = vector.broadcast %cst : f32 to vector<8x8x1xf32>
    %3 = arith.select %1, %2, %0 : vector<8x8x1xi1>, vector<8x8x1xf32>
    %cst_2 = arith.constant 6.553600e+04 : f32
    %4 = vector.broadcast %cst_2 : f32 to vector<8x8x1xf32>
    %5 = arith.minimumf %3, %4 : vector<8x8x1xf32>
    %cst_3 = arith.constant 0.000000e+00 : f32
    %6 = vector.broadcast %cst_3 : f32 to vector<8x8x1xf32>
    %7 = arith.maximumf %5, %6 : vector<8x8x1xf32>
    %c0_4 = arith.constant 0 : index
    %c0_5 = arith.constant 0 : index
    %c0_6 = arith.constant 0 : index
    %8 = vector.load %arg2[%c0_4, %c0_5, %c0_6] : memref<8x1x32xf32, #tpu.memory_space<vmem>>, vector<8x1x32xf32>
    %9 = vector.broadcast %7 : vector<8x8x1xf32> to vector<8x8x32xf32>
    %10 = vector.broadcast %8 : vector<8x1x32xf32> to vector<8x8x32xf32>
    %11 = arith.mulf %9, %10 : vector<8x8x32xf32>
    %c0_7 = arith.constant 0 : index
    %c0_8 = arith.constant 0 : index
    %c0_9 = arith.constant 0 : index
    %12 = vector.load %arg3[%c0_7, %c0_8, %c0_9] : memref<8x1x32xf32, #tpu.memory_space<vmem>>, vector<8x1x32xf32>
    %13 = vector.broadcast %12 : vector<8x1x32xf32> to vector<8x8x32xf32>
    %14 = arith.addf %11, %13 : vector<8x8x32xf32>
    %cst_10 = arith.constant 0.000000e+00 : f32
    %15 = vector.broadcast %cst_10 : f32 to vector<8x8x32xf32>
    %16 = arith.cmpf ogt, %14, %15 : vector<8x8x32xf32>
    %cst_11 = arith.constant 0.00999999977 : f32
    %17 = vector.broadcast %cst_11 : f32 to vector<8x8x32xf32>
    %18 = arith.mulf %17, %14 : vector<8x8x32xf32>
    %19 = arith.select %16, %14, %18 : vector<8x8x32xi1>, vector<8x8x32xf32>
    %c0_12 = arith.constant 0 : index
    %c0_13 = arith.constant 0 : index
    %c0_14 = arith.constant 0 : index
    %20 = vector.load %arg4[%c0_12, %c0_13, %c0_14] : memref<8x32x8xf32, #tpu.memory_space<vmem>>, vector<8x32x8xf32>
    %cst_15 = arith.constant dense<0.000000e+00> : vector<8x8x8xf32>
    %21 = tpu.matmul %19, %20, %cst_15 {dimension_numbers = #tpu.dot_dimension_numbers<[2], [1], [1], [2], [0, 0, 0, 1, 1, 2], [0], [0]>} : vector<8x8x32xf32>, vector<8x32x8xf32>, vector<8x8x8xf32> -> vector<8x8x8xf32>
    %c0_16 = arith.constant 0 : index
    %c0_17 = arith.constant 0 : index
    %c0_18 = arith.constant 0 : index
    %22 = vector.load %arg5[%c0_16, %c0_17, %c0_18] : memref<8x1x8xf32, #tpu.memory_space<vmem>>, vector<8x1x8xf32>
    %23 = vector.broadcast %22 : vector<8x1x8xf32> to vector<8x8x8xf32>
    %24 = arith.addf %21, %23 : vector<8x8x8xf32>
    %cst_19 = arith.constant 0.000000e+00 : f32
    %25 = vector.broadcast %cst_19 : f32 to vector<8x8x8xf32>
    %26 = arith.cmpf ogt, %24, %25 : vector<8x8x8xf32>
    %cst_20 = arith.constant 0.00999999977 : f32
    %27 = vector.broadcast %cst_20 : f32 to vector<8x8x8xf32>
    %28 = arith.mulf %27, %24 : vector<8x8x8xf32>
    %29 = arith.select %26, %24, %28 : vector<8x8x8xi1>, vector<8x8x8xf32>
    %c0_21 = arith.constant 0 : index
    %c0_22 = arith.constant 0 : index
    %c0_23 = arith.constant 0 : index
    %30 = vector.load %arg6[%c0_21, %c0_22, %c0_23] : memref<8x1x8xf32, #tpu.memory_space<vmem>>, vector<8x1x8xf32>
    %31 = vector.broadcast %30 : vector<8x1x8xf32> to vector<8x8x8xf32>
    %32 = arith.mulf %29, %31 : vector<8x8x8xf32>
    %cst_24 = arith.constant dense<0xFF800000> : vector<8x8xf32>
    %33 = vector.multi_reduction <maximumf>, %32, %cst_24 [2] : vector<8x8x8xf32> to vector<8x8xf32>
    %34 = vector.shape_cast %33 : vector<8x8xf32> to vector<8x8x1xf32>
    %35 = vector.broadcast %34 : vector<8x8x1xf32> to vector<8x8x8xf32>
    %36 = arith.subf %32, %35 : vector<8x8x8xf32>
    %37 = math.exp %36 : vector<8x8x8xf32>
    %cst_25 = arith.constant dense<0.000000e+00> : vector<8x8xf32>
    %38 = vector.multi_reduction <add>, %37, %cst_25 [2] : vector<8x8x8xf32> to vector<8x8xf32>
    %39 = vector.shape_cast %38 : vector<8x8xf32> to vector<8x8x1xf32>
    %40 = tpu.reciprocal %39 {approx = true} : vector<8x8x1xf32> -> vector<8x8x1xf32>
    %41 = vector.broadcast %40 : vector<8x8x1xf32> to vector<8x8x8xf32>
    %42 = arith.mulf %37, %41 : vector<8x8x8xf32>
    %43 = vector.extract_strided_slice %42 {offsets = [0, 0, 0], sizes = [1, 8, 8], strides = [1, 1, 1]} : vector<8x8x8xf32> to vector<1x8x8xf32>
    %44 = vector.shape_cast %43 : vector<1x8x8xf32> to vector<8x8xf32>
    %c0_26 = arith.constant 0 : index
    %c0_27 = arith.constant 0 : index
    %c0_28 = arith.constant 0 : index
    %45 = vector.load %arg7[%c0_26, %c0_27, %c0_28] : memref<8x8x16xf32, #tpu.memory_space<vmem>>, vector<1x8x16xf32>
    %46 = vector.shape_cast %45 : vector<1x8x16xf32> to vector<8x16xf32>
    %cst_29 = arith.constant dense<0.000000e+00> : vector<8x16xf32>
    %47 = tpu.matmul %44, %46, %cst_29 {dimension_numbers = #tpu.dot_dimension_numbers<[1], [0], [0], [1], [0, 0, 1, 1], [], []>} : vector<8x8xf32>, vector<8x16xf32>, vector<8x16xf32> -> vector<8x16xf32>
    %c0_30 = arith.constant 0 : index
    %c0_31 = arith.constant 0 : index
    %48 = vector.load %arg8[%c0_30, %c0_31] : memref<8x128xf32, #tpu.memory_space<vmem>>, vector<8x16xf32>
    tpu.vector_store %arg8[%c0_30, %c0_31], %47 {strides = array<i32>} : memref<8x128xf32, #tpu.memory_space<vmem>>, vector<8x16xf32>,
    %49 = vector.extract_strided_slice %42 {offsets = [1, 0, 0], sizes = [1, 8, 8], strides = [1, 1, 1]} : vector<8x8x8xf32> to vector<1x8x8xf32>
    %50 = vector.shape_cast %49 : vector<1x8x8xf32> to vector<8x8xf32>
    %c1 = arith.constant 1 : index
    %c0_32 = arith.constant 0 : index
    %c0_33 = arith.constant 0 : index
    %51 = vector.load %arg7[%c1, %c0_32, %c0_33] : memref<8x8x16xf32, #tpu.memory_space<vmem>>, vector<1x8x16xf32>
    %52 = vector.shape_cast %51 : vector<1x8x16xf32> to vector<8x16xf32>
    %cst_34 = arith.constant dense<0.000000e+00> : vector<8x16xf32>
    %53 = tpu.matmul %50, %52, %cst_34 {dimension_numbers = #tpu.dot_dimension_numbers<[1], [0], [0], [1], [0, 0, 1, 1], [], []>} : vector<8x8xf32>, vector<8x16xf32>, vector<8x16xf32> -> vector<8x16xf32>
    %c0_35 = arith.constant 0 : index
    %c16 = arith.constant 16 : index
    %54 = vector.load %arg8[%c0_35, %c16] : memref<8x128xf32, #tpu.memory_space<vmem>>, vector<8x16xf32>
    tpu.vector_store %arg8[%c0_35, %c16], %53 {strides = array<i32>} : memref<8x128xf32, #tpu.memory_space<vmem>>, vector<8x16xf32>,
    %55 = vector.extract_strided_slice %42 {offsets = [2, 0, 0], sizes = [1, 8, 8], strides = [1, 1, 1]} : vector<8x8x8xf32> to vector<1x8x8xf32>
    %56 = vector.shape_cast %55 : vector<1x8x8xf32> to vector<8x8xf32>
    %c2 = arith.constant 2 : index
    %c0_36 = arith.constant 0 : index
    %c0_37 = arith.constant 0 : index
    %57 = vector.load %arg7[%c2, %c0_36, %c0_37] : memref<8x8x16xf32, #tpu.memory_space<vmem>>, vector<1x8x16xf32>
    %58 = vector.shape_cast %57 : vector<1x8x16xf32> to vector<8x16xf32>
    %cst_38 = arith.constant dense<0.000000e+00> : vector<8x16xf32>
    %59 = tpu.matmul %56, %58, %cst_38 {dimension_numbers = #tpu.dot_dimension_numbers<[1], [0], [0], [1], [0, 0, 1, 1], [], []>} : vector<8x8xf32>, vector<8x16xf32>, vector<8x16xf32> -> vector<8x16xf32>
    %c0_39 = arith.constant 0 : index
    %c32 = arith.constant 32 : index
    %60 = vector.load %arg8[%c0_39, %c32] : memref<8x128xf32, #tpu.memory_space<vmem>>, vector<8x16xf32>
    tpu.vector_store %arg8[%c0_39, %c32], %59 {strides = array<i32>} : memref<8x128xf32, #tpu.memory_space<vmem>>, vector<8x16xf32>,
    %61 = vector.extract_strided_slice %42 {offsets = [3, 0, 0], sizes = [1, 8, 8], strides = [1, 1, 1]} : vector<8x8x8xf32> to vector<1x8x8xf32>
    %62 = vector.shape_cast %61 : vector<1x8x8xf32> to vector<8x8xf32>
    %c3 = arith.constant 3 : index
    %c0_40 = arith.constant 0 : index
    %c0_41 = arith.constant 0 : index
    %63 = vector.load %arg7[%c3, %c0_40, %c0_41] : memref<8x8x16xf32, #tpu.memory_space<vmem>>, vector<1x8x16xf32>
    %64 = vector.shape_cast %63 : vector<1x8x16xf32> to vector<8x16xf32>
    %cst_42 = arith.constant dense<0.000000e+00> : vector<8x16xf32>
    %65 = tpu.matmul %62, %64, %cst_42 {dimension_numbers = #tpu.dot_dimension_numbers<[1], [0], [0], [1], [0, 0, 1, 1], [], []>} : vector<8x8xf32>, vector<8x16xf32>, vector<8x16xf32> -> vector<8x16xf32>
    %c0_43 = arith.constant 0 : index
    %c48 = arith.constant 48 : index
    %66 = vector.load %arg8[%c0_43, %c48] : memref<8x128xf32, #tpu.memory_space<vmem>>, vector<8x16xf32>
    tpu.vector_store %arg8[%c0_43, %c48], %65 {strides = array<i32>} : memref<8x128xf32, #tpu.memory_space<vmem>>, vector<8x16xf32>,
    %67 = vector.extract_strided_slice %42 {offsets = [4, 0, 0], sizes = [1, 8, 8], strides = [1, 1, 1]} : vector<8x8x8xf32> to vector<1x8x8xf32>
    %68 = vector.shape_cast %67 : vector<1x8x8xf32> to vector<8x8xf32>
    %c4 = arith.constant 4 : index
    %c0_44 = arith.constant 0 : index
    %c0_45 = arith.constant 0 : index
    %69 = vector.load %arg7[%c4, %c0_44, %c0_45] : memref<8x8x16xf32, #tpu.memory_space<vmem>>, vector<1x8x16xf32>
    %70 = vector.shape_cast %69 : vector<1x8x16xf32> to vector<8x16xf32>
    %cst_46 = arith.constant dense<0.000000e+00> : vector<8x16xf32>
    %71 = tpu.matmul %68, %70, %cst_46 {dimension_numbers = #tpu.dot_dimension_numbers<[1], [0], [0], [1], [0, 0, 1, 1], [], []>} : vector<8x8xf32>, vector<8x16xf32>, vector<8x16xf32> -> vector<8x16xf32>
    %c0_47 = arith.constant 0 : index
    %c64 = arith.constant 64 : index
    %72 = vector.load %arg8[%c0_47, %c64] : memref<8x128xf32, #tpu.memory_space<vmem>>, vector<8x16xf32>
    tpu.vector_store %arg8[%c0_47, %c64], %71 {strides = array<i32>} : memref<8x128xf32, #tpu.memory_space<vmem>>, vector<8x16xf32>,
    %73 = vector.extract_strided_slice %42 {offsets = [5, 0, 0], sizes = [1, 8, 8], strides = [1, 1, 1]} : vector<8x8x8xf32> to vector<1x8x8xf32>
    %74 = vector.shape_cast %73 : vector<1x8x8xf32> to vector<8x8xf32>
    %c5 = arith.constant 5 : index
    %c0_48 = arith.constant 0 : index
    %c0_49 = arith.constant 0 : index
    %75 = vector.load %arg7[%c5, %c0_48, %c0_49] : memref<8x8x16xf32, #tpu.memory_space<vmem>>, vector<1x8x16xf32>
    %76 = vector.shape_cast %75 : vector<1x8x16xf32> to vector<8x16xf32>
    %cst_50 = arith.constant dense<0.000000e+00> : vector<8x16xf32>
    %77 = tpu.matmul %74, %76, %cst_50 {dimension_numbers = #tpu.dot_dimension_numbers<[1], [0], [0], [1], [0, 0, 1, 1], [], []>} : vector<8x8xf32>, vector<8x16xf32>, vector<8x16xf32> -> vector<8x16xf32>
    %c0_51 = arith.constant 0 : index
    %c80 = arith.constant 80 : index
    %78 = vector.load %arg8[%c0_51, %c80] : memref<8x128xf32, #tpu.memory_space<vmem>>, vector<8x16xf32>
    tpu.vector_store %arg8[%c0_51, %c80], %77 {strides = array<i32>} : memref<8x128xf32, #tpu.memory_space<vmem>>, vector<8x16xf32>,
    %79 = vector.extract_strided_slice %42 {offsets = [6, 0, 0], sizes = [1, 8, 8], strides = [1, 1, 1]} : vector<8x8x8xf32> to vector<1x8x8xf32>
    %80 = vector.shape_cast %79 : vector<1x8x8xf32> to vector<8x8xf32>
    %c6 = arith.constant 6 : index
    %c0_52 = arith.constant 0 : index
    %c0_53 = arith.constant 0 : index
    %81 = vector.load %arg7[%c6, %c0_52, %c0_53] : memref<8x8x16xf32, #tpu.memory_space<vmem>>, vector<1x8x16xf32>
    %82 = vector.shape_cast %81 : vector<1x8x16xf32> to vector<8x16xf32>
    %cst_54 = arith.constant dense<0.000000e+00> : vector<8x16xf32>
    %83 = tpu.matmul %80, %82, %cst_54 {dimension_numbers = #tpu.dot_dimension_numbers<[1], [0], [0], [1], [0, 0, 1, 1], [], []>} : vector<8x8xf32>, vector<8x16xf32>, vector<8x16xf32> -> vector<8x16xf32>
    %c0_55 = arith.constant 0 : index
    %c96 = arith.constant 96 : index
    %84 = vector.load %arg8[%c0_55, %c96] : memref<8x128xf32, #tpu.memory_space<vmem>>, vector<8x16xf32>
    tpu.vector_store %arg8[%c0_55, %c96], %83 {strides = array<i32>} : memref<8x128xf32, #tpu.memory_space<vmem>>, vector<8x16xf32>,
    %85 = vector.extract_strided_slice %42 {offsets = [7, 0, 0], sizes = [1, 8, 8], strides = [1, 1, 1]} : vector<8x8x8xf32> to vector<1x8x8xf32>
    %86 = vector.shape_cast %85 : vector<1x8x8xf32> to vector<8x8xf32>
    %c7 = arith.constant 7 : index
    %c0_56 = arith.constant 0 : index
    %c0_57 = arith.constant 0 : index
    %87 = vector.load %arg7[%c7, %c0_56, %c0_57] : memref<8x8x16xf32, #tpu.memory_space<vmem>>, vector<1x8x16xf32>
    %88 = vector.shape_cast %87 : vector<1x8x16xf32> to vector<8x16xf32>
    %cst_58 = arith.constant dense<0.000000e+00> : vector<8x16xf32>
    %89 = tpu.matmul %86, %88, %cst_58 {dimension_numbers = #tpu.dot_dimension_numbers<[1], [0], [0], [1], [0, 0, 1, 1], [], []>} : vector<8x8xf32>, vector<8x16xf32>, vector<8x16xf32> -> vector<8x16xf32>
    %c0_59 = arith.constant 0 : index
    %c112 = arith.constant 112 : index
    %90 = vector.load %arg8[%c0_59, %c112] : memref<8x128xf32, #tpu.memory_space<vmem>>, vector<8x16xf32>
    tpu.vector_store %arg8[%c0_59, %c112], %89 {strides = array<i32>} : memref<8x128xf32, #tpu.memory_space<vmem>>, vector<8x16xf32>,
    return
  }
  func.func @transform_0(%arg0: i32) -> (i32, i32, i32) {
    %c0_i32 = arith.constant 0 : i32
    %c0_i32_0 = arith.constant 0 : i32
    %c0_i32_1 = arith.constant 0 : i32
    return %arg0, %c0_i32, %c0_i32_0 : i32, i32, i32
  }
  func.func @transform_1(%arg0: i32) -> (i32, i32, i32) {
    %c0_i32 = arith.constant 0 : i32
    %c0_i32_0 = arith.constant 0 : i32
    %c0_i32_1 = arith.constant 0 : i32
    return %arg0, %c0_i32, %c0_i32_0 : i32, i32, i32
  }
  func.func @transform_2(%arg0: i32) -> (i32, i32, i32) {
    %c0_i32 = arith.constant 0 : i32
    %c0_i32_0 = arith.constant 0 : i32
    %c0_i32_1 = arith.constant 0 : i32
    return %arg0, %c0_i32, %c0_i32_0 : i32, i32, i32
  }
  func.func @transform_3(%arg0: i32) -> (i32, i32, i32) {
    %c0_i32 = arith.constant 0 : i32
    %c0_i32_0 = arith.constant 0 : i32
    %c0_i32_1 = arith.constant 0 : i32
    return %arg0, %c0_i32, %c0_i32_0 : i32, i32, i32
  }
  func.func @transform_4(%arg0: i32) -> (i32, i32, i32) {
    %c0_i32 = arith.constant 0 : i32
    %c0_i32_0 = arith.constant 0 : i32
    %c0_i32_1 = arith.constant 0 : i32
    return %arg0, %c0_i32, %c0_i32_0 : i32, i32, i32
  }
  func.func @transform_5(%arg0: i32) -> (i32, i32, i32) {
    %c0_i32 = arith.constant 0 : i32
    %c0_i32_0 = arith.constant 0 : i32
    %c0_i32_1 = arith.constant 0 : i32
    return %arg0, %c0_i32, %c0_i32_0 : i32, i32, i32
  }
  func.func @transform_6(%arg0: i32) -> (i32, i32, i32) {
    %c0_i32 = arith.constant 0 : i32
    %c0_i32_0 = arith.constant 0 : i32
    %c0_i32_1 = arith.constant 0 : i32
    return %arg0, %c0_i32, %c0_i32_0 : i32, i32, i32
  }
  func.func @transform_7(%arg0: i32) -> (i32, i32) {
    %c0_i32 = arith.constant 0 : i32
    %c0_i32_0 = arith.constant 0 : i32
    return %c0_i32, %arg0 : i32, i32
  }
}

</mosaic_0001>

<llo_original>
// kernel: video_gandalf_forward.5
$region0: #{video_gandalf_forward.5}
  #allocation0 [shape = 'u32[]', space=smem, size = 0x4, offset = 0x4, fixed_abs, tag = 'smem constant byte address 0x4 - core index']
  #allocation1 [shape = 'u32[144,128]{1,0:T(1,128)}', space=vmem, size = 0x12000, scoped, tag = 'internal scratch']
  #allocation2 [shape = 'f32[8,128]{1,0:T(8,128)}', space=vmem, size = 0x1000, scoped, tag = 'scratch operand']
  %s0 = inlined_call_operand.vmem [shape: f32[8,256], index: 0, kind: input, shape index: {}]
  %s1 = inlined_call_operand.vmem [shape: f32[256,128], index: 1, kind: input, shape index: {}]
  %s2 = inlined_call_operand.vmem [shape: f32[1,128], index: 2, kind: input, shape index: {}]
  %s3 = inlined_call_operand.vmem [shape: f32[8,128], index: 3, kind: output, shape index: {}]
  %s4 = sld [smem:[#allocation0]]
  $region30: #{video_gandalf_forward.5} parent=0
    _
  %s6 = ssub.s32 1, %s4
  %s7 = scalar_select 0, %s6, %s4
  // Predicated region
  $region2: #{video_gandalf_forward.5} parent=0 // pred_check
    _
  $region3: #{video_gandalf_forward.5} parent=0 // pred_check_branch
    %9 = sbr.rel (0) target = $region5
  $region4: #{video_gandalf_forward.5} parent=0 // pred_region
    _
  $region5: #{video_gandalf_forward.5} parent=0 // pred_fallthru
    _
  // Predicated region
  $region6: #{video_gandalf_forward.5} parent=0 // pred_check
    _
  $region7: #{video_gandalf_forward.5} parent=0 // pred_check_branch
    %11 = sbr.rel (0) target = $region9
  $region8: #{video_gandalf_forward.5} parent=0 // pred_region
    _
  $region9: #{video_gandalf_forward.5} parent=0 // pred_fallthru
    _
  // Predicated region
  $region10: #{video_gandalf_forward.5} parent=0 // pred_check
    _
  $region11: #{video_gandalf_forward.5} parent=0 // pred_check_branch
    %13 = sbr.rel (0) target = $region13
  $region12: #{video_gandalf_forward.5} parent=0 // pred_region
    _
  $region13: #{video_gandalf_forward.5} parent=0 // pred_fallthru
    _
  %p14 = scmp.eq.s32.totalorder 0, 0
  // Predicated region
  $region14: #{video_gandalf_forward.5} parent=0 // pred_check
    %p15 = pneg %p14
  $region15: #{video_gandalf_forward.5} parent=0 // pred_check_branch
    %17 = sbr.rel (%p15) target = $region17
  $region16: #{video_gandalf_forward.5} parent=0 // pred_region
    %18 = vst [vmem:[#allocation2] sm:$0xff] 0.0
  $region17: #{video_gandalf_forward.5} parent=0 // pred_fallthru
    _
  %v19 = vld [vmem:[#allocation2] sm:$0xff]
  %v20 = vld [vmem:[%s0] sm:$0xff]
  %v21 = vld [vmem:[%s0 + $0x8] sm:$0xff]
  %v22 = vld [vmem:[%s1] sm:$0xff]
  %v23 = vld [vmem:[%s1 + $0x8] sm:$0xff]
  %v24 = vld [vmem:[%s1 + $0x10] sm:$0xff]
  %v25 = vld [vmem:[%s1 + $0x18] sm:$0xff]
  %v26 = vld [vmem:[%s1 + $0x20] sm:$0xff]
  %v27 = vld [vmem:[%s1 + $0x28] sm:$0xff]
  %v28 = vld [vmem:[%s1 + $0x30] sm:$0xff]
  %v29 = vld [vmem:[%s1 + $0x38] sm:$0xff]
  %v30 = vld [vmem:[%s1 + $0x40] sm:$0xff]
  %v31 = vld [vmem:[%s1 + $0x48] sm:$0xff]
  %v32 = vld [vmem:[%s1 + $0x50] sm:$0xff]
  %v33 = vld [vmem:[%s1 + $0x58] sm:$0xff]
  %v34 = vld [vmem:[%s1 + $0x60] sm:$0xff]
  %v35 = vld [vmem:[%s1 + $0x68] sm:$0xff]
  %v36 = vld [vmem:[%s1 + $0x70] sm:$0xff]
  %v37 = vld [vmem:[%s1 + $0x78] sm:$0xff]
  %v38 = vld [vmem:[%s1 + $0x80] sm:$0xff]
  %v39 = vld [vmem:[%s1 + $0x88] sm:$0xff]
  %v40 = vld [vmem:[%s1 + $0x90] sm:$0xff]
  %v41 = vld [vmem:[%s1 + $0x98] sm:$0xff]
  %v42 = vld [vmem:[%s1 + $0xa0] sm:$0xff]
  %v43 = vld [vmem:[%s1 + $0xa8] sm:$0xff]
  %v44 = vld [vmem:[%s1 + $0xb0] sm:$0xff]
  %v45 = vld [vmem:[%s1 + $0xb8] sm:$0xff]
  %v46 = vld [vmem:[%s1 + $0xc0] sm:$0xff]
  %v47 = vld [vmem:[%s1 + $0xc8] sm:$0xff]
  %v48 = vld [vmem:[%s1 + $0xd0] sm:$0xff]
  %v49 = vld [vmem:[%s1 + $0xd8] sm:$0xff]
  %v50 = vld [vmem:[%s1 + $0xe0] sm:$0xff]
  %v51 = vld [vmem:[%s1 + $0xe8] sm:$0xff]
  %v52 = vld [vmem:[%s1 + $0xf0] sm:$0xff]
  %v53 = vld [vmem:[%s1 + $0xf8] sm:$0xff]
  %54 = vmatprep.subr.mxu0 0.0
  %55 = vmatpush1.msra.mxu0 %v37
  %56 = vmatprep.subr.mxu0 0.0
  %57 = vmatpush1.msra.mxu0 %v36
  %58 = vmatprep.subr.mxu0 0.0
  %59 = vmatpush1.msra.mxu0 %v35
  %60 = vmatprep.subr.mxu0 0.0
  %61 = vmatpush1.msra.mxu0 %v34
  %62 = vmatprep.subr.mxu0 0.0
  %63 = vmatpush1.msra.mxu0 %v33
  %64 = vmatprep.subr.mxu0 0.0
  %65 = vmatpush1.msra.mxu0 %v32
  %66 = vmatprep.subr.mxu0 0.0
  %67 = vmatpush1.msra.mxu0 %v31
  %68 = vmatprep.subr.mxu0 0.0
  %69 = vmatpush1.msra.mxu0 %v30
  %70 = vmatprep.subr.mxu0 0.0
  %71 = vmatpush1.msra.mxu0 %v29
  %72 = vmatprep.subr.mxu0 0.0
  %73 = vmatpush1.msra.mxu0 %v28
  %74 = vmatprep.subr.mxu0 0.0
  %75 = vmatpush1.msra.mxu0 %v27
  %76 = vmatprep.subr.mxu0 0.0
  %77 = vmatpush1.msra.mxu0 %v26
  %78 = vmatprep.subr.mxu0 0.0
  %79 = vmatpush1.msra.mxu0 %v25
  %80 = vmatprep.subr.mxu0 0.0
  %81 = vmatpush1.msra.mxu0 %v24
  %82 = vmatprep.subr.mxu0 0.0
  %83 = vmatpush1.msra.mxu0 %v23
  %84 = vmatprep.subr.mxu0 0.0
  %85 = vmatpush1.msra.mxu0 %v22
  %86 = vmatprep.subr.mxu0 0.0
  %87 = vmatpush2.msra.mxu0 %v53
  %88 = vmatprep.subr.mxu0 0.0
  %89 = vmatpush2.msra.mxu0 %v52
  %90 = vmatprep.subr.mxu0 0.0
  %91 = vmatpush2.msra.mxu0 %v51
  %92 = vmatprep.subr.mxu0 0.0
  %93 = vmatpush2.msra.mxu0 %v50
  %94 = vmatprep.subr.mxu0 0.0
  %95 = vmatpush2.msra.mxu0 %v49
  %96 = vmatprep.subr.mxu0 0.0
  %97 = vmatpush2.msra.mxu0 %v48
  %98 = vmatprep.subr.mxu0 0.0
  %99 = vmatpush2.msra.mxu0 %v47
  %100 = vmatprep.subr.mxu0 0.0
  %101 = vmatpush2.msra.mxu0 %v46
  %102 = vmatprep.subr.mxu0 0.0
  %103 = vmatpush2.msra.mxu0 %v45
  %104 = vmatprep.subr.mxu0 0.0
  %105 = vmatpush2.msra.mxu0 %v44
  %106 = vmatprep.subr.mxu0 0.0
  %107 = vmatpush2.msra.mxu0 %v43
  %108 = vmatprep.subr.mxu0 0.0
  %109 = vmatpush2.msra.mxu0 %v42
  %110 = vmatprep.subr.mxu0 0.0
  %111 = vmatpush2.msra.mxu0 %v41
  %112 = vmatprep.subr.mxu0 0.0
  %113 = vmatpush2.msra.mxu0 %v40
  %114 = vmatprep.subr.mxu0 0.0
  %115 = vmatpush2.msra.mxu0 %v39
  %116 = vmatprep.subr.mxu0 0.0
  %117 = vmatpush2.msra.mxu0 %v38
  %118 = vmatprep.mubr.f32.mxu0 %v21
  %119 = vmatmul.mubr.f32.gmra.mxu0 %v20
  %v120 = vpop.f32.mrf.mxu0
  %v121 = vadd.f32 0.0, %v120
  %v122 = vpop.f32.mrf.mxu0
  %123 = vdwg.mxu0
  %v124 = vadd.f32 %v19, %v121
  %125 = vst [vmem:[#allocation2] sm:$0xff] %v124
  // Predicated region
  $region18: #{video_gandalf_forward.5} parent=0 // pred_check
    %p126 = pneg %p14
  $region19: #{video_gandalf_forward.5} parent=0 // pred_check_branch
    %128 = sbr.rel (%p126) target = $region21
  $region20: #{video_gandalf_forward.5} parent=0 // pred_region
    %v129 = vld [vmem:[#allocation2] sm:$0xff]
    %v130 = vld [vmem:[%s2] sm:$0x1]
    %v132 = vlaneseq
    %v133 = vshrl.u32 %v132, 7
    %v134 = vsub.s32 0, %v133
    %v135 = vrot.slane %v130, %v134
    %v137 = vadd.f32 %v129, %v135
    %138 = vst [vmem:[%s3] sm:$0xff] %v137
  $region21: #{video_gandalf_forward.5} parent=0 // pred_fallthru
    _
  // Predicated region
  $region22: #{video_gandalf_forward.5} parent=0 // pred_check
    _
  $region23: #{video_gandalf_forward.5} parent=0 // pred_check_branch
    %140 = sbr.rel (0) target = $region25
  $region24: #{video_gandalf_forward.5} parent=0 // pred_region
    _
  $region25: #{video_gandalf_forward.5} parent=0 // pred_fallthru
    _
  // Predicated region
  $region26: #{video_gandalf_forward.5} parent=0 // pred_check
    _
  $region27: #{video_gandalf_forward.5} parent=0 // pred_check_branch
    %142 = sbr.rel (0) target = $region29
  $region28: #{video_gandalf_forward.5} parent=0 // pred_region
    _
  $region29: #{video_gandalf_forward.5} parent=0 // pred_fallthru
    _

// kernel: video_gandalf_forward.4
$region0: #{video_gandalf_forward.4}
  #allocation0 [shape = 'u32[]', space=smem, size = 0x4, offset = 0x4, fixed_abs, tag = 'smem constant byte address 0x4 - core index']
  #allocation1 [shape = 'u32[144,128]{1,0:T(1,128)}', space=vmem, size = 0x12000, scoped, tag = 'internal scratch']
  #allocation2 [shape = 'f32[8,256]{1,0:T(8,128)}', space=vmem, size = 0x2000, scoped, tag = 'scratch operand']
  %s0 = inlined_call_operand.vmem [shape: f32[8,128], index: 0, kind: input, shape index: {}]
  %s1 = inlined_call_operand.vmem [shape: f32[128,256], index: 1, kind: input, shape index: {}]
  %s2 = inlined_call_operand.vmem [shape: f32[1,256], index: 2, kind: input, shape index: {}]
  %s3 = inlined_call_operand.vmem [shape: f32[8,256], index: 3, kind: output, shape index: {}]
  %s4 = sld [smem:[#allocation0]]
  $region30: #{video_gandalf_forward.4} parent=0
    _
  %s6 = ssub.s32 1, %s4
  %s7 = scalar_select 0, %s6, %s4
  // Predicated region
  $region2: #{video_gandalf_forward.4} parent=0 // pred_check
    _
  $region3: #{video_gandalf_forward.4} parent=0 // pred_check_branch
    %9 = sbr.rel (0) target = $region5
  $region4: #{video_gandalf_forward.4} parent=0 // pred_region
    _
  $region5: #{video_gandalf_forward.4} parent=0 // pred_fallthru
    _
  // Predicated region
  $region6: #{video_gandalf_forward.4} parent=0 // pred_check
    _
  $region7: #{video_gandalf_forward.4} parent=0 // pred_check_branch
    %11 = sbr.rel (0) target = $region9
  $region8: #{video_gandalf_forward.4} parent=0 // pred_region
    _
  $region9: #{video_gandalf_forward.4} parent=0 // pred_fallthru
    _
  // Predicated region
  $region10: #{video_gandalf_forward.4} parent=0 // pred_check
    _
  $region11: #{video_gandalf_forward.4} parent=0 // pred_check_branch
    %13 = sbr.rel (0) target = $region13
  $region12: #{video_gandalf_forward.4} parent=0 // pred_region
    _
  $region13: #{video_gandalf_forward.4} parent=0 // pred_fallthru
    _
  %p14 = scmp.eq.s32.totalorder 0, 0
  // Predicated region
  $region14: #{video_gandalf_forward.4} parent=0 // pred_check
    %p15 = pneg %p14
  $region15: #{video_gandalf_forward.4} parent=0 // pred_check_branch
    %17 = sbr.rel (%p15) target = $region17
  $region16: #{video_gandalf_forward.4} parent=0 // pred_region
    %18 = vst [vmem:[#allocation2] sm:$0xff] 0.0
    %19 = vst [vmem:[#allocation2 + $0x8] sm:$0xff] 0.0
  $region17: #{video_gandalf_forward.4} parent=0 // pred_fallthru
    _
  %v20 = vld [vmem:[#allocation2] sm:$0xff]
  %v21 = vld [vmem:[#allocation2 + $0x8] sm:$0xff]
  %v22 = vld [vmem:[%s0] sm:$0xff]
  %v23 = vld [vmem:[%s1] sm:$0xff]
  %v24 = vld [vmem:[%s1 + $0x8] sm:$0xff]
  %v25 = vld [vmem:[%s1 + $0x10] sm:$0xff]
  %v26 = vld [vmem:[%s1 + $0x18] sm:$0xff]
  %v27 = vld [vmem:[%s1 + $0x20] sm:$0xff]
  %v28 = vld [vmem:[%s1 + $0x28] sm:$0xff]
  %v29 = vld [vmem:[%s1 + $0x30] sm:$0xff]
  %v30 = vld [vmem:[%s1 + $0x38] sm:$0xff]
  %v31 = vld [vmem:[%s1 + $0x40] sm:$0xff]
  %v32 = vld [vmem:[%s1 + $0x48] sm:$0xff]
  %v33 = vld [vmem:[%s1 + $0x50] sm:$0xff]
  %v34 = vld [vmem:[%s1 + $0x58] sm:$0xff]
  %v35 = vld [vmem:[%s1 + $0x60] sm:$0xff]
  %v36 = vld [vmem:[%s1 + $0x68] sm:$0xff]
  %v37 = vld [vmem:[%s1 + $0x70] sm:$0xff]
  %v38 = vld [vmem:[%s1 + $0x78] sm:$0xff]
  %v39 = vld [vmem:[%s1 + $0x80] sm:$0xff]
  %v40 = vld [vmem:[%s1 + $0x88] sm:$0xff]
  %v41 = vld [vmem:[%s1 + $0x90] sm:$0xff]
  %v42 = vld [vmem:[%s1 + $0x98] sm:$0xff]
  %v43 = vld [vmem:[%s1 + $0xa0] sm:$0xff]
  %v44 = vld [vmem:[%s1 + $0xa8] sm:$0xff]
  %v45 = vld [vmem:[%s1 + $0xb0] sm:$0xff]
  %v46 = vld [vmem:[%s1 + $0xb8] sm:$0xff]
  %v47 = vld [vmem:[%s1 + $0xc0] sm:$0xff]
  %v48 = vld [vmem:[%s1 + $0xc8] sm:$0xff]
  %v49 = vld [vmem:[%s1 + $0xd0] sm:$0xff]
  %v50 = vld [vmem:[%s1 + $0xd8] sm:$0xff]
  %v51 = vld [vmem:[%s1 + $0xe0] sm:$0xff]
  %v52 = vld [vmem:[%s1 + $0xe8] sm:$0xff]
  %v53 = vld [vmem:[%s1 + $0xf0] sm:$0xff]
  %v54 = vld [vmem:[%s1 + $0xf8] sm:$0xff]
  %55 = vmatprep.subr.mxu0 %v54
  %56 = vmatpush1.msra.mxu0 %v53
  %57 = vmatprep.subr.mxu0 %v52
  %58 = vmatpush1.msra.mxu0 %v51
  %59 = vmatprep.subr.mxu0 %v50
  %60 = vmatpush1.msra.mxu0 %v49
  %61 = vmatprep.subr.mxu0 %v48
  %62 = vmatpush1.msra.mxu0 %v47
  %63 = vmatprep.subr.mxu0 %v46
  %64 = vmatpush1.msra.mxu0 %v45
  %65 = vmatprep.subr.mxu0 %v44
  %66 = vmatpush1.msra.mxu0 %v43
  %67 = vmatprep.subr.mxu0 %v42
  %68 = vmatpush1.msra.mxu0 %v41
  %69 = vmatprep.subr.mxu0 %v40
  %70 = vmatpush1.msra.mxu0 %v39
  %71 = vmatprep.subr.mxu0 %v38
  %72 = vmatpush1.msra.mxu0 %v37
  %73 = vmatprep.subr.mxu0 %v36
  %74 = vmatpush1.msra.mxu0 %v35
  %75 = vmatprep.subr.mxu0 %v34
  %76 = vmatpush1.msra.mxu0 %v33
  %77 = vmatprep.subr.mxu0 %v32
  %78 = vmatpush1.msra.mxu0 %v31
  %79 = vmatprep.subr.mxu0 %v30
  %80 = vmatpush1.msra.mxu0 %v29
  %81 = vmatprep.subr.mxu0 %v28
  %82 = vmatpush1.msra.mxu0 %v27
  %83 = vmatprep.subr.mxu0 %v26
  %84 = vmatpush1.msra.mxu0 %v25
  %85 = vmatprep.subr.mxu0 %v24
  %86 = vmatpush1.msra.mxu0 %v23
  %87 = vmatprep.subr.mxu0 0.0
  %88 = vmatpush2.msra.mxu0 0.0
  %89 = vmatprep.subr.mxu0 0.0
  %90 = vmatpush2.msra.mxu0 0.0
  %91 = vmatprep.subr.mxu0 0.0
  %92 = vmatpush2.msra.mxu0 0.0
  %93 = vmatprep.subr.mxu0 0.0
  %94 = vmatpush2.msra.mxu0 0.0
  %95 = vmatprep.subr.mxu0 0.0
  %96 = vmatpush2.msra.mxu0 0.0
  %97 = vmatprep.subr.mxu0 0.0
  %98 = vmatpush2.msra.mxu0 0.0
  %99 = vmatprep.subr.mxu0 0.0
  %100 = vmatpush2.msra.mxu0 0.0
  %101 = vmatprep.subr.mxu0 0.0
  %102 = vmatpush2.msra.mxu0 0.0
  %103 = vmatprep.subr.mxu0 0.0
  %104 = vmatpush2.msra.mxu0 0.0
  %105 = vmatprep.subr.mxu0 0.0
  %106 = vmatpush2.msra.mxu0 0.0
  %107 = vmatprep.subr.mxu0 0.0
  %108 = vmatpush2.msra.mxu0 0.0
  %109 = vmatprep.subr.mxu0 0.0
  %110 = vmatpush2.msra.mxu0 0.0
  %111 = vmatprep.subr.mxu0 0.0
  %112 = vmatpush2.msra.mxu0 0.0
  %113 = vmatprep.subr.mxu0 0.0
  %114 = vmatpush2.msra.mxu0 0.0
  %115 = vmatprep.subr.mxu0 0.0
  %116 = vmatpush2.msra.mxu0 0.0
  %117 = vmatprep.subr.mxu0 0.0
  %118 = vmatpush2.msra.mxu0 0.0
  %119 = vmatprep.mubr.f32.mxu0 0.0
  %120 = vmatmul.mubr.f32.gmra.mxu0 %v22
  %v121 = vpop.f32.mrf.mxu0
  %v122 = vadd.f32 0.0, %v121
  %v123 = vpop.f32.mrf.mxu0
  %v124 = vadd.f32 0.0, %v123
  %125 = vdwg.mxu0
  %v126 = vadd.f32 %v20, %v122
  %v127 = vadd.f32 %v21, %v124
  %128 = vst [vmem:[#allocation2] sm:$0xff] %v126
  %129 = vst [vmem:[#allocation2 + $0x8] sm:$0xff] %v127
  // Predicated region
  $region18: #{video_gandalf_forward.4} parent=0 // pred_check
    %p130 = pneg %p14
  $region19: #{video_gandalf_forward.4} parent=0 // pred_check_branch
    %132 = sbr.rel (%p130) target = $region21
  $region20: #{video_gandalf_forward.4} parent=0 // pred_region
    %v133 = vld [vmem:[#allocation2] sm:$0xff]
    %v134 = vld [vmem:[#allocation2 + $0x8] sm:$0xff]
    %v135 = vld [vmem:[%s2] sm:$0x3]
    %v137 = vlaneseq
    %v138 = vshrl.u32 %v137, 7
    %v139 = vsub.s32 0, %v138
    %v140 = vrot.slane %v135, %v139
    %v141 = vlaneseq
    %v142 = vshrl.u32 %v141, 7
    %v143 = vsub.s32 1, %v142
    %v144 = vrot.slane %v135, %v143
    %v147 = vadd.f32 %v133, %v140
    %v148 = vadd.f32 %v134, %v144
    %v149 = vmax.f32 %v147, 0.0
    %v150 = vmax.f32 %v148, 0.0
    %151 = vst [vmem:[%s3] sm:$0xff] %v149
    %152 = vst [vmem:[%s3 + $0x8] sm:$0xff] %v150
  $region21: #{video_gandalf_forward.4} parent=0 // pred_fallthru
    _
  // Predicated region
  $region22: #{video_gandalf_forward.4} parent=0 // pred_check
    _
  $region23: #{video_gandalf_forward.4} parent=0 // pred_check_branch
    %154 = sbr.rel (0) target = $region25
  $region24: #{video_gandalf_forward.4} parent=0 // pred_region
    _
  $region25: #{video_gandalf_forward.4} parent=0 // pred_fallthru
    _
  // Predicated region
  $region26: #{video_gandalf_forward.4} parent=0 // pred_check
    _
  $region27: #{video_gandalf_forward.4} parent=0 // pred_check_branch
    %156 = sbr.rel (0) target = $region29
  $region28: #{video_gandalf_forward.4} parent=0 // pred_region
    _
  $region29: #{video_gandalf_forward.4} parent=0 // pred_fallthru
    _

// kernel: video_gandalf_forward.3
$region0: #{video_gandalf_forward.3}
  #allocation0 [shape = 'u32[]', space=smem, size = 0x4, offset = 0x4, fixed_abs, tag = 'smem constant byte address 0x4 - core index']
  #allocation1 [shape = 'u32[144,128]{1,0:T(1,128)}', space=vmem, size = 0x12000, scoped, tag = 'internal scratch']
  %s0 = inlined_call_operand.vmem [shape: f32[8,8,1], index: 0, kind: input, shape index: {}]
  %s1 = inlined_call_operand.vmem [shape: f32[8,1,32], index: 1, kind: input, shape index: {}]
  %s2 = inlined_call_operand.vmem [shape: f32[8,1,32], index: 2, kind: input, shape index: {}]
  %s3 = inlined_call_operand.vmem [shape: f32[8,32,8], index: 3, kind: input, shape index: {}]
  %s4 = inlined_call_operand.vmem [shape: f32[8,1,8], index: 4, kind: input, shape index: {}]
  %s5 = inlined_call_operand.vmem [shape: f32[8,1,8], index: 5, kind: input, shape index: {}]
  %s6 = inlined_call_operand.vmem [shape: f32[8,8,16], index: 6, kind: input, shape index: {}]
  %s7 = inlined_call_operand.vmem [shape: f32[8,128], index: 7, kind: output, shape index: {}]
  %s8 = sld [smem:[#allocation0]]
  $region38: #{video_gandalf_forward.3} parent=0
    _
  %s10 = ssub.s32 1, %s8
  %s11 = scalar_select 0, %s10, %s8
  // Predicated region
  $region2: #{video_gandalf_forward.3} parent=0 // pred_check
    _
  $region3: #{video_gandalf_forward.3} parent=0 // pred_check_branch
    %13 = sbr.rel (0) target = $region5
  $region4: #{video_gandalf_forward.3} parent=0 // pred_region
    _
  $region5: #{video_gandalf_forward.3} parent=0 // pred_fallthru
    _
  // Predicated region
  $region6: #{video_gandalf_forward.3} parent=0 // pred_check
    _
  $region7: #{video_gandalf_forward.3} parent=0 // pred_check_branch
    %15 = sbr.rel (0) target = $region9
  $region8: #{video_gandalf_forward.3} parent=0 // pred_region
    _
  $region9: #{video_gandalf_forward.3} parent=0 // pred_fallthru
    _
  // Predicated region
  $region10: #{video_gandalf_forward.3} parent=0 // pred_check
    _
  $region11: #{video_gandalf_forward.3} parent=0 // pred_check_branch
    %17 = sbr.rel (0) target = $region13
  $region12: #{video_gandalf_forward.3} parent=0 // pred_region
    _
  $region13: #{video_gandalf_forward.3} parent=0 // pred_fallthru
    _
  // Predicated region
  $region14: #{video_gandalf_forward.3} parent=0 // pred_check
    _
  $region15: #{video_gandalf_forward.3} parent=0 // pred_check_branch
    %19 = sbr.rel (0) target = $region17
  $region16: #{video_gandalf_forward.3} parent=0 // pred_region
    _
  $region17: #{video_gandalf_forward.3} parent=0 // pred_fallthru
    _
  // Predicated region
  $region18: #{video_gandalf_forward.3} parent=0 // pred_check
    _
  $region19: #{video_gandalf_forward.3} parent=0 // pred_check_branch
    %21 = sbr.rel (0) target = $region21
  $region20: #{video_gandalf_forward.3} parent=0 // pred_region
    _
  $region21: #{video_gandalf_forward.3} parent=0 // pred_fallthru
    _
  // Predicated region
  $region22: #{video_gandalf_forward.3} parent=0 // pred_check
    _
  $region23: #{video_gandalf_forward.3} parent=0 // pred_check_branch
    %23 = sbr.rel (0) target = $region25
  $region24: #{video_gandalf_forward.3} parent=0 // pred_region
    _
  $region25: #{video_gandalf_forward.3} parent=0 // pred_fallthru
    _
  // Predicated region
  $region26: #{video_gandalf_forward.3} parent=0 // pred_check
    _
  $region27: #{video_gandalf_forward.3} parent=0 // pred_check_branch
    %25 = sbr.rel (0) target = $region29
  $region28: #{video_gandalf_forward.3} parent=0 // pred_region
    _
  $region29: #{video_gandalf_forward.3} parent=0 // pred_fallthru
    _
  %v26 = vld [vmem:[%s0] sm:$0xff]
  %v27 = vld [vmem:[%s0 + $0x8] sm:$0xff]
  %v28 = vld [vmem:[%s0 + $0x10] sm:$0xff]
  %v29 = vld [vmem:[%s0 + $0x18] sm:$0xff]
  %v30 = vld [vmem:[%s0 + $0x20] sm:$0xff]
  %v31 = vld [vmem:[%s0 + $0x28] sm:$0xff]
  %v32 = vld [vmem:[%s0 + $0x30] sm:$0xff]
  %v33 = vld [vmem:[%s0 + $0x38] sm:$0xff]
  %vm34 = vcmp.ne.f32.partialorder %v26, %v26
  %vm35 = vcmp.ne.f32.partialorder %v27, %v27
  %vm36 = vcmp.ne.f32.partialorder %v28, %v28
  %vm37 = vcmp.ne.f32.partialorder %v29, %v29
  %vm38 = vcmp.ne.f32.partialorder %v30, %v30
  %vm39 = vcmp.ne.f32.partialorder %v31, %v31
  %vm40 = vcmp.ne.f32.partialorder %v32, %v32
  %vm41 = vcmp.ne.f32.partialorder %v33, %v33
  %v42 = vsel %vm34, 0.0, %v26
  %v43 = vsel %vm35, 0.0, %v27
  %v44 = vsel %vm36, 0.0, %v28
  %v45 = vsel %vm37, 0.0, %v29
  %v46 = vsel %vm38, 0.0, %v30
  %v47 = vsel %vm39, 0.0, %v31
  %v48 = vsel %vm40, 0.0, %v32
  %v49 = vsel %vm41, 0.0, %v33
  %v50 = vmin.f32 %v42, 65536.0
  %v51 = vmin.f32 %v43, 65536.0
  %v52 = vmin.f32 %v44, 65536.0
  %v53 = vmin.f32 %v45, 65536.0
  %v54 = vmin.f32 %v46, 65536.0
  %v55 = vmin.f32 %v47, 65536.0
  %v56 = vmin.f32 %v48, 65536.0
  %v57 = vmin.f32 %v49, 65536.0
  %v58 = vmax.f32 %v50, 0.0
  %v59 = vmax.f32 %v51, 0.0
  %v60 = vmax.f32 %v52, 0.0
  %v61 = vmax.f32 %v53, 0.0
  %v62 = vmax.f32 %v54, 0.0
  %v63 = vmax.f32 %v55, 0.0
  %v64 = vmax.f32 %v56, 0.0
  %v65 = vmax.f32 %v57, 0.0
  %v66 = vld [vmem:[%s1] sm:$0x1]
  %v67 = vld [vmem:[%s1 + $0x1] sm:$0x1]
  %v68 = vld [vmem:[%s1 + $0x2] sm:$0x1]
  %v69 = vld [vmem:[%s1 + $0x3] sm:$0x1]
  %v70 = vld [vmem:[%s1 + $0x4] sm:$0x1]
  %v71 = vld [vmem:[%s1 + $0x5] sm:$0x1]
  %v72 = vld [vmem:[%s1 + $0x6] sm:$0x1]
  %v73 = vld [vmem:[%s1 + $0x7] sm:$0x1]
  %75 = vset.pattern.permute.xlu0 0
  %76 = vperm.xlu0 %75, %v58
  %v77 = vpop.permute.xlu0 %76
  %80 = vset.pattern.permute.xlu0 0
  %81 = vperm.xlu0 %80, %v59
  %v82 = vpop.permute.xlu0 %81
  %85 = vset.pattern.permute.xlu0 0
  %86 = vperm.xlu0 %85, %v60
  %v87 = vpop.permute.xlu0 %86
  %90 = vset.pattern.permute.xlu0 0
  %91 = vperm.xlu0 %90, %v61
  %v92 = vpop.permute.xlu0 %91
  %95 = vset.pattern.permute.xlu0 0
  %96 = vperm.xlu0 %95, %v62
  %v97 = vpop.permute.xlu0 %96
  %100 = vset.pattern.permute.xlu0 0
  %101 = vperm.xlu0 %100, %v63
  %v102 = vpop.permute.xlu0 %101
  %105 = vset.pattern.permute.xlu0 0
  %106 = vperm.xlu0 %105, %v64
  %v107 = vpop.permute.xlu0 %106
  %110 = vset.pattern.permute.xlu0 0
  %111 = vperm.xlu0 %110, %v65
  %v112 = vpop.permute.xlu0 %111
  %v122 = vlaneseq
  %v123 = vshrl.u32 %v122, 7
  %v124 = vsub.s32 0, %v123
  %v125 = vrot.slane %v66, %v124
  %v126 = vlaneseq
  %v127 = vshrl.u32 %v126, 7
  %v128 = vsub.s32 0, %v127
  %v129 = vrot.slane %v67, %v128
  %v130 = vlaneseq
  %v131 = vshrl.u32 %v130, 7
  %v132 = vsub.s32 0, %v131
  %v133 = vrot.slane %v68, %v132
  %v134 = vlaneseq
  %v135 = vshrl.u32 %v134, 7
  %v136 = vsub.s32 0, %v135
  %v137 = vrot.slane %v69, %v136
  %v138 = vlaneseq
  %v139 = vshrl.u32 %v138, 7
  %v140 = vsub.s32 0, %v139
  %v141 = vrot.slane %v70, %v140
  %v142 = vlaneseq
  %v143 = vshrl.u32 %v142, 7
  %v144 = vsub.s32 0, %v143
  %v145 = vrot.slane %v71, %v144
  %v146 = vlaneseq
  %v147 = vshrl.u32 %v146, 7
  %v148 = vsub.s32 0, %v147
  %v149 = vrot.slane %v72, %v148
  %v150 = vlaneseq
  %v151 = vshrl.u32 %v150, 7
  %v152 = vsub.s32 0, %v151
  %v153 = vrot.slane %v73, %v152
  %v162 = vmul.f32 %v77, %v125
  %v163 = vmul.f32 %v82, %v129
  %v164 = vmul.f32 %v87, %v133
  %v165 = vmul.f32 %v92, %v137
  %v166 = vmul.f32 %v97, %v141
  %v167 = vmul.f32 %v102, %v145
  %v168 = vmul.f32 %v107, %v149
  %v169 = vmul.f32 %v112, %v153
  %v170 = vld [vmem:[%s2] sm:$0x1]
  %v171 = vld [vmem:[%s2 + $0x1] sm:$0x1]
  %v172 = vld [vmem:[%s2 + $0x2] sm:$0x1]
  %v173 = vld [vmem:[%s2 + $0x3] sm:$0x1]
  %v174 = vld [vmem:[%s2 + $0x4] sm:$0x1]
  %v175 = vld [vmem:[%s2 + $0x5] sm:$0x1]
  %v176 = vld [vmem:[%s2 + $0x6] sm:$0x1]
  %v177 = vld [vmem:[%s2 + $0x7] sm:$0x1]
  %v186 = vlaneseq
  %v187 = vshrl.u32 %v186, 7
  %v188 = vsub.s32 0, %v187
  %v189 = vrot.slane %v170, %v188
  %v190 = vlaneseq
  %v191 = vshrl.u32 %v190, 7
  %v192 = vsub.s32 0, %v191
  %v193 = vrot.slane %v171, %v192
  %v194 = vlaneseq
  %v195 = vshrl.u32 %v194, 7
  %v196 = vsub.s32 0, %v195
  %v197 = vrot.slane %v172, %v196
  %v198 = vlaneseq
  %v199 = vshrl.u32 %v198, 7
  %v200 = vsub.s32 0, %v199
  %v201 = vrot.slane %v173, %v200
  %v202 = vlaneseq
  %v203 = vshrl.u32 %v202, 7
  %v204 = vsub.s32 0, %v203
  %v205 = vrot.slane %v174, %v204
  %v206 = vlaneseq
  %v207 = vshrl.u32 %v206, 7
  %v208 = vsub.s32 0, %v207
  %v209 = vrot.slane %v175, %v208
  %v210 = vlaneseq
  %v211 = vshrl.u32 %v210, 7
  %v212 = vsub.s32 0, %v211
  %v213 = vrot.slane %v176, %v212
  %v214 = vlaneseq
  %v215 = vshrl.u32 %v214, 7
  %v216 = vsub.s32 0, %v215
  %v217 = vrot.slane %v177, %v216
  %v226 = vadd.f32 %v162, %v189
  %v227 = vadd.f32 %v163, %v193
  %v228 = vadd.f32 %v164, %v197
  %v229 = vadd.f32 %v165, %v201
  %v230 = vadd.f32 %v166, %v205
  %v231 = vadd.f32 %v167, %v209
  %v232 = vadd.f32 %v168, %v213
  %v233 = vadd.f32 %v169, %v217
  %vm234 = vcmp.gt.f32.partialorder %v226, 0.0
  %vm235 = vcmp.gt.f32.partialorder %v227, 0.0
  %vm236 = vcmp.gt.f32.partialorder %v228, 0.0
  %vm237 = vcmp.gt.f32.partialorder %v229, 0.0
  %vm238 = vcmp.gt.f32.partialorder %v230, 0.0
  %vm239 = vcmp.gt.f32.partialorder %v231, 0.0
  %vm240 = vcmp.gt.f32.partialorder %v232, 0.0
  %vm241 = vcmp.gt.f32.partialorder %v233, 0.0
  %v242 = vmul.f32 %v226, 0.01
  %v243 = vmul.f32 %v227, 0.01
  %v244 = vmul.f32 %v228, 0.01
  %v245 = vmul.f32 %v229, 0.01
  %v246 = vmul.f32 %v230, 0.01
  %v247 = vmul.f32 %v231, 0.01
  %v248 = vmul.f32 %v232, 0.01
  %v249 = vmul.f32 %v233, 0.01
  %v250 = vsel %vm234, %v226, %v242
  %v251 = vsel %vm235, %v227, %v243
  %v252 = vsel %vm236, %v228, %v244
  %v253 = vsel %vm237, %v229, %v245
  %v254 = vsel %vm238, %v230, %v246
  %v255 = vsel %vm239, %v231, %v247
  %v256 = vsel %vm240, %v232, %v248
  %v257 = vsel %vm241, %v233, %v249
  %v258 = vld [vmem:[%s3] sm:$0xff]
  %v259 = vld [vmem:[%s3 + $0x8] sm:$0xff]
  %v260 = vld [vmem:[%s3 + $0x10] sm:$0xff]
  %v261 = vld [vmem:[%s3 + $0x18] sm:$0xff]
  %v262 = vld [vmem:[%s3 + $0x20] sm:$0xff]
  %v263 = vld [vmem:[%s3 + $0x28] sm:$0xff]
  %v264 = vld [vmem:[%s3 + $0x30] sm:$0xff]
  %v265 = vld [vmem:[%s3 + $0x38] sm:$0xff]
  %v266 = vld [vmem:[%s3 + $0x40] sm:$0xff]
  %v267 = vld [vmem:[%s3 + $0x48] sm:$0xff]
  %v268 = vld [vmem:[%s3 + $0x50] sm:$0xff]
  %v269 = vld [vmem:[%s3 + $0x58] sm:$0xff]
  %v270 = vld [vmem:[%s3 + $0x60] sm:$0xff]
  %v271 = vld [vmem:[%s3 + $0x68] sm:$0xff]
  %v272 = vld [vmem:[%s3 + $0x70] sm:$0xff]
  %v273 = vld [vmem:[%s3 + $0x78] sm:$0xff]
  %v274 = vld [vmem:[%s3 + $0x80] sm:$0xff]
  %v275 = vld [vmem:[%s3 + $0x88] sm:$0xff]
  %v276 = vld [vmem:[%s3 + $0x90] sm:$0xff]
  %v277 = vld [vmem:[%s3 + $0x98] sm:$0xff]
  %v278 = vld [vmem:[%s3 + $0xa0] sm:$0xff]
  %v279 = vld [vmem:[%s3 + $0xa8] sm:$0xff]
  %v280 = vld [vmem:[%s3 + $0xb0] sm:$0xff]
  %v281 = vld [vmem:[%s3 + $0xb8] sm:$0xff]
  %v282 = vld [vmem:[%s3 + $0xc0] sm:$0xff]
  %v283 = vld [vmem:[%s3 + $0xc8] sm:$0xff]
  %v284 = vld [vmem:[%s3 + $0xd0] sm:$0xff]
  %v285 = vld [vmem:[%s3 + $0xd8] sm:$0xff]
  %v286 = vld [vmem:[%s3 + $0xe0] sm:$0xff]
  %v287 = vld [vmem:[%s3 + $0xe8] sm:$0xff]
  %v288 = vld [vmem:[%s3 + $0xf0] sm:$0xff]
  %v289 = vld [vmem:[%s3 + $0xf8] sm:$0xff]
  %v290 = vld [vmem:[%s4] sm:$0x1]
  %v291 = vld [vmem:[%s4 + $0x1] sm:$0x1]
  %v292 = vld [vmem:[%s4 + $0x2] sm:$0x1]
  %v293 = vld [vmem:[%s4 + $0x3] sm:$0x1]
  %v294 = vld [vmem:[%s4 + $0x4] sm:$0x1]
  %v295 = vld [vmem:[%s4 + $0x5] sm:$0x1]
  %v296 = vld [vmem:[%s4 + $0x6] sm:$0x1]
  %v297 = vld [vmem:[%s4 + $0x7] sm:$0x1]
  %v306 = vlaneseq
  %v307 = vshrl.u32 %v306, 7
  %v308 = vsub.s32 0, %v307
  %v309 = vrot.slane %v290, %v308
  %v310 = vlaneseq
  %v311 = vshrl.u32 %v310, 7
  %v312 = vsub.s32 0, %v311
  %v313 = vrot.slane %v291, %v312
  %v314 = vlaneseq
  %v315 = vshrl.u32 %v314, 7
  %v316 = vsub.s32 0, %v315
  %v317 = vrot.slane %v292, %v316
  %v318 = vlaneseq
  %v319 = vshrl.u32 %v318, 7
  %v320 = vsub.s32 0, %v319
  %v321 = vrot.slane %v293, %v320
  %v322 = vlaneseq
  %v323 = vshrl.u32 %v322, 7
  %v324 = vsub.s32 0, %v323
  %v325 = vrot.slane %v294, %v324
  %v326 = vlaneseq
  %v327 = vshrl.u32 %v326, 7
  %v328 = vsub.s32 0, %v327
  %v329 = vrot.slane %v295, %v328
  %v330 = vlaneseq
  %v331 = vshrl.u32 %v330, 7
  %v332 = vsub.s32 0, %v331
  %v333 = vrot.slane %v296, %v332
  %v334 = vlaneseq
  %v335 = vshrl.u32 %v334, 7
  %v336 = vsub.s32 0, %v335
  %v337 = vrot.slane %v297, %v336
  %vm346 = vcmask 261120
  %v348 = vsel %vm346, %v250, 0
  %350 = vmatprep.subr.mxu0 0.0
  %351 = vmatpush1.msra.mxu0 0.0
  %352 = vmatprep.subr.mxu0 0.0
  %353 = vmatpush1.msra.mxu0 0.0
  %354 = vmatprep.subr.mxu0 0.0
  %355 = vmatpush1.msra.mxu0 0.0
  %356 = vmatprep.subr.mxu0 0.0
  %357 = vmatpush1.msra.mxu0 0.0
  %358 = vmatprep.subr.mxu0 0.0
  %359 = vmatpush1.msra.mxu0 0.0
  %360 = vmatprep.subr.mxu0 0.0
  %361 = vmatpush1.msra.mxu0 0.0
  %362 = vmatprep.subr.mxu0 0.0
  %363 = vmatpush1.msra.mxu0 0.0
  %364 = vmatprep.subr.mxu0 0.0
  %365 = vmatpush1.msra.mxu0 0.0
  %366 = vmatprep.subr.mxu0 0.0
  %367 = vmatpush1.msra.mxu0 0.0
  %368 = vmatprep.subr.mxu0 0.0
  %369 = vmatpush1.msra.mxu0 0.0
  %370 = vmatprep.subr.mxu0 0.0
  %371 = vmatpush1.msra.mxu0 0.0
  %372 = vmatprep.subr.mxu0 0.0
  %373 = vmatpush1.msra.mxu0 0.0
  %374 = vmatprep.subr.mxu0 0.0
  %375 = vmatpush1.msra.mxu0 %v261
  %376 = vmatprep.subr.mxu0 0.0
  %377 = vmatpush1.msra.mxu0 %v260
  %378 = vmatprep.subr.mxu0 0.0
  %379 = vmatpush1.msra.mxu0 %v259
  %380 = vmatprep.subr.mxu0 0.0
  %381 = vmatpush1.msra.mxu0 %v258
  %382 = vmatprep.subr.mxu0 0.0
  %383 = vmatpush2.msra.mxu0 0.0
  %384 = vmatprep.subr.mxu0 0.0
  %385 = vmatpush2.msra.mxu0 0.0
  %386 = vmatprep.subr.mxu0 0.0
  %387 = vmatpush2.msra.mxu0 0.0
  %388 = vmatprep.subr.mxu0 0.0
  %389 = vmatpush2.msra.mxu0 0.0
  %390 = vmatprep.subr.mxu0 0.0
  %391 = vmatpush2.msra.mxu0 0.0
  %392 = vmatprep.subr.mxu0 0.0
  %393 = vmatpush2.msra.mxu0 0.0
  %394 = vmatprep.subr.mxu0 0.0
  %395 = vmatpush2.msra.mxu0 0.0
  %396 = vmatprep.subr.mxu0 0.0
  %397 = vmatpush2.msra.mxu0 0.0
  %398 = vmatprep.subr.mxu0 0.0
  %399 = vmatpush2.msra.mxu0 0.0
  %400 = vmatprep.subr.mxu0 0.0
  %401 = vmatpush2.msra.mxu0 0.0
  %402 = vmatprep.subr.mxu0 0.0
  %403 = vmatpush2.msra.mxu0 0.0
  %404 = vmatprep.subr.mxu0 0.0
  %405 = vmatpush2.msra.mxu0 0.0
  %406 = vmatprep.subr.mxu0 0.0
  %407 = vmatpush2.msra.mxu0 0.0
  %408 = vmatprep.subr.mxu0 0.0
  %409 = vmatpush2.msra.mxu0 0.0
  %410 = vmatprep.subr.mxu0 0.0
  %411 = vmatpush2.msra.mxu0 0.0
  %412 = vmatprep.subr.mxu0 0.0
  %413 = vmatpush2.msra.mxu0 0.0
  %414 = vmatprep.mubr.f32.mxu0 0.0
  %415 = vmatmul.mubr.f32.gmra.mxu0 %v348
  %v416 = vpop.f32.mrf.mxu0
  %v417 = vadd.f32 %v309, %v416
  %v418 = vpop.f32.mrf.mxu0
  %419 = vdwg.mxu0
  %v421 = vsel %vm346, %v251, 0
  %423 = vmatprep.subr.mxu0 0.0
  %424 = vmatpush1.msra.mxu0 0.0
  %425 = vmatprep.subr.mxu0 0.0
  %426 = vmatpush1.msra.mxu0 0.0
  %427 = vmatprep.subr.mxu0 0.0
  %428 = vmatpush1.msra.mxu0 0.0
  %429 = vmatprep.subr.mxu0 0.0
  %430 = vmatpush1.msra.mxu0 0.0
  %431 = vmatprep.subr.mxu0 0.0
  %432 = vmatpush1.msra.mxu0 0.0
  %433 = vmatprep.subr.mxu0 0.0
  %434 = vmatpush1.msra.mxu0 0.0
  %435 = vmatprep.subr.mxu0 0.0
  %436 = vmatpush1.msra.mxu0 0.0
  %437 = vmatprep.subr.mxu0 0.0
  %438 = vmatpush1.msra.mxu0 0.0
  %439 = vmatprep.subr.mxu0 0.0
  %440 = vmatpush1.msra.mxu0 0.0
  %441 = vmatprep.subr.mxu0 0.0
  %442 = vmatpush1.msra.mxu0 0.0
  %443 = vmatprep.subr.mxu0 0.0
  %444 = vmatpush1.msra.mxu0 0.0
  %445 = vmatprep.subr.mxu0 0.0
  %446 = vmatpush1.msra.mxu0 0.0
  %447 = vmatprep.subr.mxu0 0.0
  %448 = vmatpush1.msra.mxu0 %v265
  %449 = vmatprep.subr.mxu0 0.0
  %450 = vmatpush1.msra.mxu0 %v264
  %451 = vmatprep.subr.mxu0 0.0
  %452 = vmatpush1.msra.mxu0 %v263
  %453 = vmatprep.subr.mxu0 0.0
  %454 = vmatpush1.msra.mxu0 %v262
  %455 = vmatprep.subr.mxu0 0.0
  %456 = vmatpush2.msra.mxu0 0.0
  %457 = vmatprep.subr.mxu0 0.0
  %458 = vmatpush2.msra.mxu0 0.0
  %459 = vmatprep.subr.mxu0 0.0
  %460 = vmatpush2.msra.mxu0 0.0
  %461 = vmatprep.subr.mxu0 0.0
  %462 = vmatpush2.msra.mxu0 0.0
  %463 = vmatprep.subr.mxu0 0.0
  %464 = vmatpush2.msra.mxu0 0.0
  %465 = vmatprep.subr.mxu0 0.0
  %466 = vmatpush2.msra.mxu0 0.0
  %467 = vmatprep.subr.mxu0 0.0
  %468 = vmatpush2.msra.mxu0 0.0
  %469 = vmatprep.subr.mxu0 0.0
  %470 = vmatpush2.msra.mxu0 0.0
  %471 = vmatprep.subr.mxu0 0.0
  %472 = vmatpush2.msra.mxu0 0.0
  %473 = vmatprep.subr.mxu0 0.0
  %474 = vmatpush2.msra.mxu0 0.0
  %475 = vmatprep.subr.mxu0 0.0
  %476 = vmatpush2.msra.mxu0 0.0
  %477 = vmatprep.subr.mxu0 0.0
  %478 = vmatpush2.msra.mxu0 0.0
  %479 = vmatprep.subr.mxu0 0.0
  %480 = vmatpush2.msra.mxu0 0.0
  %481 = vmatprep.subr.mxu0 0.0
  %482 = vmatpush2.msra.mxu0 0.0
  %483 = vmatprep.subr.mxu0 0.0
  %484 = vmatpush2.msra.mxu0 0.0
  %485 = vmatprep.subr.mxu0 0.0
  %486 = vmatpush2.msra.mxu0 0.0
  %487 = vmatprep.mubr.f32.mxu0 0.0
  %488 = vmatmul.mubr.f32.gmra.mxu0 %v421
  %v489 = vpop.f32.mrf.mxu0
  %v490 = vadd.f32 %v313, %v489
  %v491 = vpop.f32.mrf.mxu0
  %492 = vdwg.mxu0
  %v494 = vsel %vm346, %v252, 0
  %496 = vmatprep.subr.mxu0 0.0
  %497 = vmatpush1.msra.mxu0 0.0
  %498 = vmatprep.subr.mxu0 0.0
  %499 = vmatpush1.msra.mxu0 0.0
  %500 = vmatprep.subr.mxu0 0.0
  %501 = vmatpush1.msra.mxu0 0.0
  %502 = vmatprep.subr.mxu0 0.0
  %503 = vmatpush1.msra.mxu0 0.0
  %504 = vmatprep.subr.mxu0 0.0
  %505 = vmatpush1.msra.mxu0 0.0
  %506 = vmatprep.subr.mxu0 0.0
  %507 = vmatpush1.msra.mxu0 0.0
  %508 = vmatprep.subr.mxu0 0.0
  %509 = vmatpush1.msra.mxu0 0.0
  %510 = vmatprep.subr.mxu0 0.0
  %511 = vmatpush1.msra.mxu0 0.0
  %512 = vmatprep.subr.mxu0 0.0
  %513 = vmatpush1.msra.mxu0 0.0
  %514 = vmatprep.subr.mxu0 0.0
  %515 = vmatpush1.msra.mxu0 0.0
  %516 = vmatprep.subr.mxu0 0.0
  %517 = vmatpush1.msra.mxu0 0.0
  %518 = vmatprep.subr.mxu0 0.0
  %519 = vmatpush1.msra.mxu0 0.0
  %520 = vmatprep.subr.mxu0 0.0
  %521 = vmatpush1.msra.mxu0 %v269
  %522 = vmatprep.subr.mxu0 0.0
  %523 = vmatpush1.msra.mxu0 %v268
  %524 = vmatprep.subr.mxu0 0.0
  %525 = vmatpush1.msra.mxu0 %v267
  %526 = vmatprep.subr.mxu0 0.0
  %527 = vmatpush1.msra.mxu0 %v266
  %528 = vmatprep.subr.mxu0 0.0
  %529 = vmatpush2.msra.mxu0 0.0
  %530 = vmatprep.subr.mxu0 0.0
  %531 = vmatpush2.msra.mxu0 0.0
  %532 = vmatprep.subr.mxu0 0.0
  %533 = vmatpush2.msra.mxu0 0.0
  %534 = vmatprep.subr.mxu0 0.0
  %535 = vmatpush2.msra.mxu0 0.0
  %536 = vmatprep.subr.mxu0 0.0
  %537 = vmatpush2.msra.mxu0 0.0
  %538 = vmatprep.subr.mxu0 0.0
  %539 = vmatpush2.msra.mxu0 0.0
  %540 = vmatprep.subr.mxu0 0.0
  %541 = vmatpush2.msra.mxu0 0.0
  %542 = vmatprep.subr.mxu0 0.0
  %543 = vmatpush2.msra.mxu0 0.0
  %544 = vmatprep.subr.mxu0 0.0
  %545 = vmatpush2.msra.mxu0 0.0
  %546 = vmatprep.subr.mxu0 0.0
  %547 = vmatpush2.msra.mxu0 0.0
  %548 = vmatprep.subr.mxu0 0.0
  %549 = vmatpush2.msra.mxu0 0.0
  %550 = vmatprep.subr.mxu0 0.0
  %551 = vmatpush2.msra.mxu0 0.0
  %552 = vmatprep.subr.mxu0 0.0
  %553 = vmatpush2.msra.mxu0 0.0
  %554 = vmatprep.subr.mxu0 0.0
  %555 = vmatpush2.msra.mxu0 0.0
  %556 = vmatprep.subr.mxu0 0.0
  %557 = vmatpush2.msra.mxu0 0.0
  %558 = vmatprep.subr.mxu0 0.0
  %559 = vmatpush2.msra.mxu0 0.0
  %560 = vmatprep.mubr.f32.mxu0 0.0
  %561 = vmatmul.mubr.f32.gmra.mxu0 %v494
  %v562 = vpop.f32.mrf.mxu0
  %v563 = vadd.f32 %v317, %v562
  %v564 = vpop.f32.mrf.mxu0
  %565 = vdwg.mxu0
  %v567 = vsel %vm346, %v253, 0
  %569 = vmatprep.subr.mxu0 0.0
  %570 = vmatpush1.msra.mxu0 0.0
  %571 = vmatprep.subr.mxu0 0.0
  %572 = vmatpush1.msra.mxu0 0.0
  %573 = vmatprep.subr.mxu0 0.0
  %574 = vmatpush1.msra.mxu0 0.0
  %575 = vmatprep.subr.mxu0 0.0
  %576 = vmatpush1.msra.mxu0 0.0
  %577 = vmatprep.subr.mxu0 0.0
  %578 = vmatpush1.msra.mxu0 0.0
  %579 = vmatprep.subr.mxu0 0.0
  %580 = vmatpush1.msra.mxu0 0.0
  %581 = vmatprep.subr.mxu0 0.0
  %582 = vmatpush1.msra.mxu0 0.0
  %583 = vmatprep.subr.mxu0 0.0
  %584 = vmatpush1.msra.mxu0 0.0
  %585 = vmatprep.subr.mxu0 0.0
  %586 = vmatpush1.msra.mxu0 0.0
  %587 = vmatprep.subr.mxu0 0.0
  %588 = vmatpush1.msra.mxu0 0.0
  %589 = vmatprep.subr.mxu0 0.0
  %590 = vmatpush1.msra.mxu0 0.0
  %591 = vmatprep.subr.mxu0 0.0
  %592 = vmatpush1.msra.mxu0 0.0
  %593 = vmatprep.subr.mxu0 0.0
  %594 = vmatpush1.msra.mxu0 %v273
  %595 = vmatprep.subr.mxu0 0.0
  %596 = vmatpush1.msra.mxu0 %v272
  %597 = vmatprep.subr.mxu0 0.0
  %598 = vmatpush1.msra.mxu0 %v271
  %599 = vmatprep.subr.mxu0 0.0
  %600 = vmatpush1.msra.mxu0 %v270
  %601 = vmatprep.subr.mxu0 0.0
  %602 = vmatpush2.msra.mxu0 0.0
  %603 = vmatprep.subr.mxu0 0.0
  %604 = vmatpush2.msra.mxu0 0.0
  %605 = vmatprep.subr.mxu0 0.0
  %606 = vmatpush2.msra.mxu0 0.0
  %607 = vmatprep.subr.mxu0 0.0
  %608 = vmatpush2.msra.mxu0 0.0
  %609 = vmatprep.subr.mxu0 0.0
  %610 = vmatpush2.msra.mxu0 0.0
  %611 = vmatprep.subr.mxu0 0.0
  %612 = vmatpush2.msra.mxu0 0.0
  %613 = vmatprep.subr.mxu0 0.0
  %614 = vmatpush2.msra.mxu0 0.0
  %615 = vmatprep.subr.mxu0 0.0
  %616 = vmatpush2.msra.mxu0 0.0
  %617 = vmatprep.subr.mxu0 0.0
  %618 = vmatpush2.msra.mxu0 0.0
  %619 = vmatprep.subr.mxu0 0.0
  %620 = vmatpush2.msra.mxu0 0.0
  %621 = vmatprep.subr.mxu0 0.0
  %622 = vmatpush2.msra.mxu0 0.0
  %623 = vmatprep.subr.mxu0 0.0
  %624 = vmatpush2.msra.mxu0 0.0
  %625 = vmatprep.subr.mxu0 0.0
  %626 = vmatpush2.msra.mxu0 0.0
  %627 = vmatprep.subr.mxu0 0.0
  %628 = vmatpush2.msra.mxu0 0.0
  %629 = vmatprep.subr.mxu0 0.0
  %630 = vmatpush2.msra.mxu0 0.0
  %631 = vmatprep.subr.mxu0 0.0
  %632 = vmatpush2.msra.mxu0 0.0
  %633 = vmatprep.mubr.f32.mxu0 0.0
  %634 = vmatmul.mubr.f32.gmra.mxu0 %v567
  %v635 = vpop.f32.mrf.mxu0
  %v636 = vadd.f32 %v321, %v635
  %v637 = vpop.f32.mrf.mxu0
  %638 = vdwg.mxu0
  %v640 = vsel %vm346, %v254, 0
  %642 = vmatprep.subr.mxu0 0.0
  %643 = vmatpush1.msra.mxu0 0.0
  %644 = vmatprep.subr.mxu0 0.0
  %645 = vmatpush1.msra.mxu0 0.0
  %646 = vmatprep.subr.mxu0 0.0
  %647 = vmatpush1.msra.mxu0 0.0
  %648 = vmatprep.subr.mxu0 0.0
  %649 = vmatpush1.msra.mxu0 0.0
  %650 = vmatprep.subr.mxu0 0.0
  %651 = vmatpush1.msra.mxu0 0.0
  %652 = vmatprep.subr.mxu0 0.0
  %653 = vmatpush1.msra.mxu0 0.0
  %654 = vmatprep.subr.mxu0 0.0
  %655 = vmatpush1.msra.mxu0 0.0
  %656 = vmatprep.subr.mxu0 0.0
  %657 = vmatpush1.msra.mxu0 0.0
  %658 = vmatprep.subr.mxu0 0.0
  %659 = vmatpush1.msra.mxu0 0.0
  %660 = vmatprep.subr.mxu0 0.0
  %661 = vmatpush1.msra.mxu0 0.0
  %662 = vmatprep.subr.mxu0 0.0
  %663 = vmatpush1.msra.mxu0 0.0
  %664 = vmatprep.subr.mxu0 0.0
  %665 = vmatpush1.msra.mxu0 0.0
  %666 = vmatprep.subr.mxu0 0.0
  %667 = vmatpush1.msra.mxu0 %v277
  %668 = vmatprep.subr.mxu0 0.0
  %669 = vmatpush1.msra.mxu0 %v276
  %670 = vmatprep.subr.mxu0 0.0
  %671 = vmatpush1.msra.mxu0 %v275
  %672 = vmatprep.subr.mxu0 0.0
  %673 = vmatpush1.msra.mxu0 %v274
  %674 = vmatprep.subr.mxu0 0.0
  %675 = vmatpush2.msra.mxu0 0.0
  %676 = vmatprep.subr.mxu0 0.0
  %677 = vmatpush2.msra.mxu0 0.0
  %678 = vmatprep.subr.mxu0 0.0
  %679 = vmatpush2.msra.mxu0 0.0
  %680 = vmatprep.subr.mxu0 0.0
  %681 = vmatpush2.msra.mxu0 0.0
  %682 = vmatprep.subr.mxu0 0.0
  %683 = vmatpush2.msra.mxu0 0.0
  %684 = vmatprep.subr.mxu0 0.0
  %685 = vmatpush2.msra.mxu0 0.0
  %686 = vmatprep.subr.mxu0 0.0
  %687 = vmatpush2.msra.mxu0 0.0
  %688 = vmatprep.subr.mxu0 0.0
  %689 = vmatpush2.msra.mxu0 0.0
  %690 = vmatprep.subr.mxu0 0.0
  %691 = vmatpush2.msra.mxu0 0.0
  %692 = vmatprep.subr.mxu0 0.0
  %693 = vmatpush2.msra.mxu0 0.0
  %694 = vmatprep.subr.mxu0 0.0
  %695 = vmatpush2.msra.mxu0 0.0
  %696 = vmatprep.subr.mxu0 0.0
  %697 = vmatpush2.msra.mxu0 0.0
  %698 = vmatprep.subr.mxu0 0.0
  %699 = vmatpush2.msra.mxu0 0.0
  %700 = vmatprep.subr.mxu0 0.0
  %701 = vmatpush2.msra.mxu0 0.0
  %702 = vmatprep.subr.mxu0 0.0
  %703 = vmatpush2.msra.mxu0 0.0
  %704 = vmatprep.subr.mxu0 0.0
  %705 = vmatpush2.msra.mxu0 0.0
  %706 = vmatprep.mubr.f32.mxu0 0.0
  %707 = vmatmul.mubr.f32.gmra.mxu0 %v640
  %v708 = vpop.f32.mrf.mxu0
  %v709 = vadd.f32 %v325, %v708
  %v710 = vpop.f32.mrf.mxu0
  %711 = vdwg.mxu0
  %v713 = vsel %vm346, %v255, 0
  %715 = vmatprep.subr.mxu0 0.0
  %716 = vmatpush1.msra.mxu0 0.0
  %717 = vmatprep.subr.mxu0 0.0
  %718 = vmatpush1.msra.mxu0 0.0
  %719 = vmatprep.subr.mxu0 0.0
  %720 = vmatpush1.msra.mxu0 0.0
  %721 = vmatprep.subr.mxu0 0.0
  %722 = vmatpush1.msra.mxu0 0.0
  %723 = vmatprep.subr.mxu0 0.0
  %724 = vmatpush1.msra.mxu0 0.0
  %725 = vmatprep.subr.mxu0 0.0
  %726 = vmatpush1.msra.mxu0 0.0
  %727 = vmatprep.subr.mxu0 0.0
  %728 = vmatpush1.msra.mxu0 0.0
  %729 = vmatprep.subr.mxu0 0.0
  %730 = vmatpush1.msra.mxu0 0.0
  %731 = vmatprep.subr.mxu0 0.0
  %732 = vmatpush1.msra.mxu0 0.0
  %733 = vmatprep.subr.mxu0 0.0
  %734 = vmatpush1.msra.mxu0 0.0
  %735 = vmatprep.subr.mxu0 0.0
  %736 = vmatpush1.msra.mxu0 0.0
  %737 = vmatprep.subr.mxu0 0.0
  %738 = vmatpush1.msra.mxu0 0.0
  %739 = vmatprep.subr.mxu0 0.0
  %740 = vmatpush1.msra.mxu0 %v281
  %741 = vmatprep.subr.mxu0 0.0
  %742 = vmatpush1.msra.mxu0 %v280
  %743 = vmatprep.subr.mxu0 0.0
  %744 = vmatpush1.msra.mxu0 %v279
  %745 = vmatprep.subr.mxu0 0.0
  %746 = vmatpush1.msra.mxu0 %v278
  %747 = vmatprep.subr.mxu0 0.0
  %748 = vmatpush2.msra.mxu0 0.0
  %749 = vmatprep.subr.mxu0 0.0
  %750 = vmatpush2.msra.mxu0 0.0
  %751 = vmatprep.subr.mxu0 0.0
  %752 = vmatpush2.msra.mxu0 0.0
  %753 = vmatprep.subr.mxu0 0.0
  %754 = vmatpush2.msra.mxu0 0.0
  %755 = vmatprep.subr.mxu0 0.0
  %756 = vmatpush2.msra.mxu0 0.0
  %757 = vmatprep.subr.mxu0 0.0
  %758 = vmatpush2.msra.mxu0 0.0
  %759 = vmatprep.subr.mxu0 0.0
  %760 = vmatpush2.msra.mxu0 0.0
  %761 = vmatprep.subr.mxu0 0.0
  %762 = vmatpush2.msra.mxu0 0.0
  %763 = vmatprep.subr.mxu0 0.0
  %764 = vmatpush2.msra.mxu0 0.0
  %765 = vmatprep.subr.mxu0 0.0
  %766 = vmatpush2.msra.mxu0 0.0
  %767 = vmatprep.subr.mxu0 0.0
  %768 = vmatpush2.msra.mxu0 0.0
  %769 = vmatprep.subr.mxu0 0.0
  %770 = vmatpush2.msra.mxu0 0.0
  %771 = vmatprep.subr.mxu0 0.0
  %772 = vmatpush2.msra.mxu0 0.0
  %773 = vmatprep.subr.mxu0 0.0
  %774 = vmatpush2.msra.mxu0 0.0
  %775 = vmatprep.subr.mxu0 0.0
  %776 = vmatpush2.msra.mxu0 0.0
  %777 = vmatprep.subr.mxu0 0.0
  %778 = vmatpush2.msra.mxu0 0.0
  %779 = vmatprep.mubr.f32.mxu0 0.0
  %780 = vmatmul.mubr.f32.gmra.mxu0 %v713
  %v781 = vpop.f32.mrf.mxu0
  %v782 = vadd.f32 %v329, %v781
  %v783 = vpop.f32.mrf.mxu0
  %784 = vdwg.mxu0
  %v786 = vsel %vm346, %v256, 0
  %788 = vmatprep.subr.mxu0 0.0
  %789 = vmatpush1.msra.mxu0 0.0
  %790 = vmatprep.subr.mxu0 0.0
  %791 = vmatpush1.msra.mxu0 0.0
  %792 = vmatprep.subr.mxu0 0.0
  %793 = vmatpush1.msra.mxu0 0.0
  %794 = vmatprep.subr.mxu0 0.0
  %795 = vmatpush1.msra.mxu0 0.0
  %796 = vmatprep.subr.mxu0 0.0
  %797 = vmatpush1.msra.mxu0 0.0
  %798 = vmatprep.subr.mxu0 0.0
  %799 = vmatpush1.msra.mxu0 0.0
  %800 = vmatprep.subr.mxu0 0.0
  %801 = vmatpush1.msra.mxu0 0.0
  %802 = vmatprep.subr.mxu0 0.0
  %803 = vmatpush1.msra.mxu0 0.0
  %804 = vmatprep.subr.mxu0 0.0
  %805 = vmatpush1.msra.mxu0 0.0
  %806 = vmatprep.subr.mxu0 0.0
  %807 = vmatpush1.msra.mxu0 0.0
  %808 = vmatprep.subr.mxu0 0.0
  %809 = vmatpush1.msra.mxu0 0.0
  %810 = vmatprep.subr.mxu0 0.0
  %811 = vmatpush1.msra.mxu0 0.0
  %812 = vmatprep.subr.mxu0 0.0
  %813 = vmatpush1.msra.mxu0 %v285
  %814 = vmatprep.subr.mxu0 0.0
  %815 = vmatpush1.msra.mxu0 %v284
  %816 = vmatprep.subr.mxu0 0.0
  %817 = vmatpush1.msra.mxu0 %v283
  %818 = vmatprep.subr.mxu0 0.0
  %819 = vmatpush1.msra.mxu0 %v282
  %820 = vmatprep.subr.mxu0 0.0
  %821 = vmatpush2.msra.mxu0 0.0
  %822 = vmatprep.subr.mxu0 0.0
  %823 = vmatpush2.msra.mxu0 0.0
  %824 = vmatprep.subr.mxu0 0.0
  %825 = vmatpush2.msra.mxu0 0.0
  %826 = vmatprep.subr.mxu0 0.0
  %827 = vmatpush2.msra.mxu0 0.0
  %828 = vmatprep.subr.mxu0 0.0
  %829 = vmatpush2.msra.mxu0 0.0
  %830 = vmatprep.subr.mxu0 0.0
  %831 = vmatpush2.msra.mxu0 0.0
  %832 = vmatprep.subr.mxu0 0.0
  %833 = vmatpush2.msra.mxu0 0.0
  %834 = vmatprep.subr.mxu0 0.0
  %835 = vmatpush2.msra.mxu0 0.0
  %836 = vmatprep.subr.mxu0 0.0
  %837 = vmatpush2.msra.mxu0 0.0
  %838 = vmatprep.subr.mxu0 0.0
  %839 = vmatpush2.msra.mxu0 0.0
  %840 = vmatprep.subr.mxu0 0.0
  %841 = vmatpush2.msra.mxu0 0.0
  %842 = vmatprep.subr.mxu0 0.0
  %843 = vmatpush2.msra.mxu0 0.0
  %844 = vmatprep.subr.mxu0 0.0
  %845 = vmatpush2.msra.mxu0 0.0
  %846 = vmatprep.subr.mxu0 0.0
  %847 = vmatpush2.msra.mxu0 0.0
  %848 = vmatprep.subr.mxu0 0.0
  %849 = vmatpush2.msra.mxu0 0.0
  %850 = vmatprep.subr.mxu0 0.0
  %851 = vmatpush2.msra.mxu0 0.0
  %852 = vmatprep.mubr.f32.mxu0 0.0
  %853 = vmatmul.mubr.f32.gmra.mxu0 %v786
  %v854 = vpop.f32.mrf.mxu0
  %v855 = vadd.f32 %v333, %v854
  %v856 = vpop.f32.mrf.mxu0
  %857 = vdwg.mxu0
  %v859 = vsel %vm346, %v257, 0
  %861 = vmatprep.subr.mxu0 0.0
  %862 = vmatpush1.msra.mxu0 0.0
  %863 = vmatprep.subr.mxu0 0.0
  %864 = vmatpush1.msra.mxu0 0.0
  %865 = vmatprep.subr.mxu0 0.0
  %866 = vmatpush1.msra.mxu0 0.0
  %867 = vmatprep.subr.mxu0 0.0
  %868 = vmatpush1.msra.mxu0 0.0
  %869 = vmatprep.subr.mxu0 0.0
  %870 = vmatpush1.msra.mxu0 0.0
  %871 = vmatprep.subr.mxu0 0.0
  %872 = vmatpush1.msra.mxu0 0.0
  %873 = vmatprep.subr.mxu0 0.0
  %874 = vmatpush1.msra.mxu0 0.0
  %875 = vmatprep.subr.mxu0 0.0
  %876 = vmatpush1.msra.mxu0 0.0
  %877 = vmatprep.subr.mxu0 0.0
  %878 = vmatpush1.msra.mxu0 0.0
  %879 = vmatprep.subr.mxu0 0.0
  %880 = vmatpush1.msra.mxu0 0.0
  %881 = vmatprep.subr.mxu0 0.0
  %882 = vmatpush1.msra.mxu0 0.0
  %883 = vmatprep.subr.mxu0 0.0
  %884 = vmatpush1.msra.mxu0 0.0
  %885 = vmatprep.subr.mxu0 0.0
  %886 = vmatpush1.msra.mxu0 %v289
  %887 = vmatprep.subr.mxu0 0.0
  %888 = vmatpush1.msra.mxu0 %v288
  %889 = vmatprep.subr.mxu0 0.0
  %890 = vmatpush1.msra.mxu0 %v287
  %891 = vmatprep.subr.mxu0 0.0
  %892 = vmatpush1.msra.mxu0 %v286
  %893 = vmatprep.subr.mxu0 0.0
  %894 = vmatpush2.msra.mxu0 0.0
  %895 = vmatprep.subr.mxu0 0.0
  %896 = vmatpush2.msra.mxu0 0.0
  %897 = vmatprep.subr.mxu0 0.0
  %898 = vmatpush2.msra.mxu0 0.0
  %899 = vmatprep.subr.mxu0 0.0
  %900 = vmatpush2.msra.mxu0 0.0
  %901 = vmatprep.subr.mxu0 0.0
  %902 = vmatpush2.msra.mxu0 0.0
  %903 = vmatprep.subr.mxu0 0.0
  %904 = vmatpush2.msra.mxu0 0.0
  %905 = vmatprep.subr.mxu0 0.0
  %906 = vmatpush2.msra.mxu0 0.0
  %907 = vmatprep.subr.mxu0 0.0
  %908 = vmatpush2.msra.mxu0 0.0
  %909 = vmatprep.subr.mxu0 0.0
  %910 = vmatpush2.msra.mxu0 0.0
  %911 = vmatprep.subr.mxu0 0.0
  %912 = vmatpush2.msra.mxu0 0.0
  %913 = vmatprep.subr.mxu0 0.0
  %914 = vmatpush2.msra.mxu0 0.0
  %915 = vmatprep.subr.mxu0 0.0
  %916 = vmatpush2.msra.mxu0 0.0
  %917 = vmatprep.subr.mxu0 0.0
  %918 = vmatpush2.msra.mxu0 0.0
  %919 = vmatprep.subr.mxu0 0.0
  %920 = vmatpush2.msra.mxu0 0.0
  %921 = vmatprep.subr.mxu0 0.0
  %922 = vmatpush2.msra.mxu0 0.0
  %923 = vmatprep.subr.mxu0 0.0
  %924 = vmatpush2.msra.mxu0 0.0
  %925 = vmatprep.mubr.f32.mxu0 0.0
  %926 = vmatmul.mubr.f32.gmra.mxu0 %v859
  %v927 = vpop.f32.mrf.mxu0
  %v928 = vadd.f32 %v337, %v927
  %v929 = vpop.f32.mrf.mxu0
  %930 = vdwg.mxu0
  %vm931 = vcmp.gt.f32.partialorder %v417, 0.0
  %vm932 = vcmp.gt.f32.partialorder %v490, 0.0
  %vm933 = vcmp.gt.f32.partialorder %v563, 0.0
  %vm934 = vcmp.gt.f32.partialorder %v636, 0.0
  %vm935 = vcmp.gt.f32.partialorder %v709, 0.0
  %vm936 = vcmp.gt.f32.partialorder %v782, 0.0
  %vm937 = vcmp.gt.f32.partialorder %v855, 0.0
  %vm938 = vcmp.gt.f32.partialorder %v928, 0.0
  %v939 = vmul.f32 %v417, 0.01
  %v940 = vmul.f32 %v490, 0.01
  %v941 = vmul.f32 %v563, 0.01
  %v942 = vmul.f32 %v636, 0.01
  %v943 = vmul.f32 %v709, 0.01
  %v944 = vmul.f32 %v782, 0.01
  %v945 = vmul.f32 %v855, 0.01
  %v946 = vmul.f32 %v928, 0.01
  %v947 = vsel %vm931, %v417, %v939
  %v948 = vsel %vm932, %v490, %v940
  %v949 = vsel %vm933, %v563, %v941
  %v950 = vsel %vm934, %v636, %v942
  %v951 = vsel %vm935, %v709, %v943
  %v952 = vsel %vm936, %v782, %v944
  %v953 = vsel %vm937, %v855, %v945
  %v954 = vsel %vm938, %v928, %v946
  %v955 = vld [vmem:[%s5] sm:$0x1]
  %v956 = vld [vmem:[%s5 + $0x1] sm:$0x1]
  %v957 = vld [vmem:[%s5 + $0x2] sm:$0x1]
  %v958 = vld [vmem:[%s5 + $0x3] sm:$0x1]
  %v959 = vld [vmem:[%s5 + $0x4] sm:$0x1]
  %v960 = vld [vmem:[%s5 + $0x5] sm:$0x1]
  %v961 = vld [vmem:[%s5 + $0x6] sm:$0x1]
  %v962 = vld [vmem:[%s5 + $0x7] sm:$0x1]
  %v971 = vlaneseq
  %v972 = vshrl.u32 %v971, 7
  %v973 = vsub.s32 0, %v972
  %v974 = vrot.slane %v955, %v973
  %v975 = vlaneseq
  %v976 = vshrl.u32 %v975, 7
  %v977 = vsub.s32 0, %v976
  %v978 = vrot.slane %v956, %v977
  %v979 = vlaneseq
  %v980 = vshrl.u32 %v979, 7
  %v981 = vsub.s32 0, %v980
  %v982 = vrot.slane %v957, %v981
  %v983 = vlaneseq
  %v984 = vshrl.u32 %v983, 7
  %v985 = vsub.s32 0, %v984
  %v986 = vrot.slane %v958, %v985
  %v987 = vlaneseq
  %v988 = vshrl.u32 %v987, 7
  %v989 = vsub.s32 0, %v988
  %v990 = vrot.slane %v959, %v989
  %v991 = vlaneseq
  %v992 = vshrl.u32 %v991, 7
  %v993 = vsub.s32 0, %v992
  %v994 = vrot.slane %v960, %v993
  %v995 = vlaneseq
  %v996 = vshrl.u32 %v995, 7
  %v997 = vsub.s32 0, %v996
  %v998 = vrot.slane %v961, %v997
  %v999 = vlaneseq
  %v1000 = vshrl.u32 %v999, 7
  %v1001 = vsub.s32 0, %v1000
  %v1002 = vrot.slane %v962, %v1001
  %v1011 = vmul.f32 %v947, %v974
  %v1012 = vmul.f32 %v948, %v978
  %v1013 = vmul.f32 %v949, %v982
  %v1014 = vmul.f32 %v950, %v986
  %v1015 = vmul.f32 %v951, %v990
  %v1016 = vmul.f32 %v952, %v994
  %v1017 = vmul.f32 %v953, %v998
  %v1018 = vmul.f32 %v954, %v1002
  %vm1019 = vcmask 64512
  %v1020 = vsel %vm1019, %v1011, -inf
  %1021 = vmax.xlane.f32.xlu0 %v1020
  %v1022 = vpop.xlane.xlu0 %1021
  %v1023 = vsel %vm1019, %v1012, -inf
  %1024 = vmax.xlane.f32.xlu0 %v1023
  %v1025 = vpop.xlane.xlu0 %1024
  %v1026 = vsel %vm1019, %v1013, -inf
  %1027 = vmax.xlane.f32.xlu0 %v1026
  %v1028 = vpop.xlane.xlu0 %1027
  %v1029 = vsel %vm1019, %v1014, -inf
  %1030 = vmax.xlane.f32.xlu0 %v1029
  %v1031 = vpop.xlane.xlu0 %1030
  %v1032 = vsel %vm1019, %v1015, -inf
  %1033 = vmax.xlane.f32.xlu0 %v1032
  %v1034 = vpop.xlane.xlu0 %1033
  %v1035 = vsel %vm1019, %v1016, -inf
  %1036 = vmax.xlane.f32.xlu0 %v1035
  %v1037 = vpop.xlane.xlu0 %1036
  %v1038 = vsel %vm1019, %v1017, -inf
  %1039 = vmax.xlane.f32.xlu0 %v1038
  %v1040 = vpop.xlane.xlu0 %1039
  %v1041 = vsel %vm1019, %v1018, -inf
  %1042 = vmax.xlane.f32.xlu0 %v1041
  %v1043 = vpop.xlane.xlu0 %1042
  %v1044 = vsub.f32 %v1011, %v1022
  %v1045 = vsub.f32 %v1012, %v1025
  %v1046 = vsub.f32 %v1013, %v1028
  %v1047 = vsub.f32 %v1014, %v1031
  %v1048 = vsub.f32 %v1015, %v1034
  %v1049 = vsub.f32 %v1016, %v1037
  %v1050 = vsub.f32 %v1017, %v1040
  %v1051 = vsub.f32 %v1018, %v1043
  %v1052 = vmul.f32 %v1044, 1.442695
  %v1053 = vpow.pop %v1052
  %v1054 = vmul.f32 %v1045, 1.442695
  %v1055 = vpow.pop %v1054
  %v1056 = vmul.f32 %v1046, 1.442695
  %v1057 = vpow.pop %v1056
  %v1058 = vmul.f32 %v1047, 1.442695
  %v1059 = vpow.pop %v1058
  %v1060 = vmul.f32 %v1048, 1.442695
  %v1061 = vpow.pop %v1060
  %v1062 = vmul.f32 %v1049, 1.442695
  %v1063 = vpow.pop %v1062
  %v1064 = vmul.f32 %v1050, 1.442695
  %v1065 = vpow.pop %v1064
  %v1066 = vmul.f32 %v1051, 1.442695
  %v1067 = vpow.pop %v1066
  %v1068 = vsel %vm1019, %v1053, 0.0
  %1069 = vadd.xlane.f32.xlu0 %v1068
  %v1070 = vpop.xlane.xlu0 %1069
  %v1071 = vsel %vm1019, %v1055, 0.0
  %1072 = vadd.xlane.f32.xlu0 %v1071
  %v1073 = vpop.xlane.xlu0 %1072
  %v1074 = vsel %vm1019, %v1057, 0.0
  %1075 = vadd.xlane.f32.xlu0 %v1074
  %v1076 = vpop.xlane.xlu0 %1075
  %v1077 = vsel %vm1019, %v1059, 0.0
  %1078 = vadd.xlane.f32.xlu0 %v1077
  %v1079 = vpop.xlane.xlu0 %1078
  %v1080 = vsel %vm1019, %v1061, 0.0
  %1081 = vadd.xlane.f32.xlu0 %v1080
  %v1082 = vpop.xlane.xlu0 %1081
  %v1083 = vsel %vm1019, %v1063, 0.0
  %1084 = vadd.xlane.f32.xlu0 %v1083
  %v1085 = vpop.xlane.xlu0 %1084
  %v1086 = vsel %vm1019, %v1065, 0.0
  %1087 = vadd.xlane.f32.xlu0 %v1086
  %v1088 = vpop.xlane.xlu0 %1087
  %v1089 = vsel %vm1019, %v1067, 0.0
  %1090 = vadd.xlane.f32.xlu0 %v1089
  %v1091 = vpop.xlane.xlu0 %1090
  %v1092 = vrcp.pop %v1070
  %v1093 = vrcp.pop %v1073
  %v1094 = vrcp.pop %v1076
  %v1095 = vrcp.pop %v1079
  %v1096 = vrcp.pop %v1082
  %v1097 = vrcp.pop %v1085
  %v1098 = vrcp.pop %v1088
  %v1099 = vrcp.pop %v1091
  %v1100 = vmul.f32 %v1053, %v1092
  %v1101 = vmul.f32 %v1055, %v1093
  %v1102 = vmul.f32 %v1057, %v1094
  %v1103 = vmul.f32 %v1059, %v1095
  %v1104 = vmul.f32 %v1061, %v1096
  %v1105 = vmul.f32 %v1063, %v1097
  %v1106 = vmul.f32 %v1065, %v1098
  %v1107 = vmul.f32 %v1067, %v1099
  %v1108 = vld [vmem:[%s6] sm:$0xff]
  %v1110 = vsel %vm1019, %v1100, 0
  %1112 = vmatprep.subr.mxu0 0.0
  %1113 = vmatpush1.msra.mxu0 0.0
  %1114 = vmatprep.subr.mxu0 0.0
  %1115 = vmatpush1.msra.mxu0 0.0
  %1116 = vmatprep.subr.mxu0 0.0
  %1117 = vmatpush1.msra.mxu0 0.0
  %1118 = vmatprep.subr.mxu0 0.0
  %1119 = vmatpush1.msra.mxu0 0.0
  %1120 = vmatprep.subr.mxu0 0.0
  %1121 = vmatpush1.msra.mxu0 0.0
  %1122 = vmatprep.subr.mxu0 0.0
  %1123 = vmatpush1.msra.mxu0 0.0
  %1124 = vmatprep.subr.mxu0 0.0
  %1125 = vmatpush1.msra.mxu0 0.0
  %1126 = vmatprep.subr.mxu0 0.0
  %1127 = vmatpush1.msra.mxu0 0.0
  %1128 = vmatprep.subr.mxu0 0.0
  %1129 = vmatpush1.msra.mxu0 0.0
  %1130 = vmatprep.subr.mxu0 0.0
  %1131 = vmatpush1.msra.mxu0 0.0
  %1132 = vmatprep.subr.mxu0 0.0
  %1133 = vmatpush1.msra.mxu0 0.0
  %1134 = vmatprep.subr.mxu0 0.0
  %1135 = vmatpush1.msra.mxu0 0.0
  %1136 = vmatprep.subr.mxu0 0.0
  %1137 = vmatpush1.msra.mxu0 0.0
  %1138 = vmatprep.subr.mxu0 0.0
  %1139 = vmatpush1.msra.mxu0 0.0
  %1140 = vmatprep.subr.mxu0 0.0
  %1141 = vmatpush1.msra.mxu0 0.0
  %1142 = vmatprep.subr.mxu0 0.0
  %1143 = vmatpush1.msra.mxu0 %v1108
  %1144 = vmatprep.subr.mxu0 0.0
  %1145 = vmatpush2.msra.mxu0 0.0
  %1146 = vmatprep.subr.mxu0 0.0
  %1147 = vmatpush2.msra.mxu0 0.0
  %1148 = vmatprep.subr.mxu0 0.0
  %1149 = vmatpush2.msra.mxu0 0.0
  %1150 = vmatprep.subr.mxu0 0.0
  %1151 = vmatpush2.msra.mxu0 0.0
  %1152 = vmatprep.subr.mxu0 0.0
  %1153 = vmatpush2.msra.mxu0 0.0
  %1154 = vmatprep.subr.mxu0 0.0
  %1155 = vmatpush2.msra.mxu0 0.0
  %1156 = vmatprep.subr.mxu0 0.0
  %1157 = vmatpush2.msra.mxu0 0.0
  %1158 = vmatprep.subr.mxu0 0.0
  %1159 = vmatpush2.msra.mxu0 0.0
  %1160 = vmatprep.subr.mxu0 0.0
  %1161 = vmatpush2.msra.mxu0 0.0
  %1162 = vmatprep.subr.mxu0 0.0
  %1163 = vmatpush2.msra.mxu0 0.0
  %1164 = vmatprep.subr.mxu0 0.0
  %1165 = vmatpush2.msra.mxu0 0.0
  %1166 = vmatprep.subr.mxu0 0.0
  %1167 = vmatpush2.msra.mxu0 0.0
  %1168 = vmatprep.subr.mxu0 0.0
  %1169 = vmatpush2.msra.mxu0 0.0
  %1170 = vmatprep.subr.mxu0 0.0
  %1171 = vmatpush2.msra.mxu0 0.0
  %1172 = vmatprep.subr.mxu0 0.0
  %1173 = vmatpush2.msra.mxu0 0.0
  %1174 = vmatprep.subr.mxu0 0.0
  %1175 = vmatpush2.msra.mxu0 0.0
  %1176 = vmatprep.mubr.f32.mxu0 0.0
  %1177 = vmatmul.mubr.f32.gmra.mxu0 %v1110
  %v1178 = vpop.f32.mrf.mxu0
  %v1179 = vadd.f32 0.0, %v1178
  %v1180 = vpop.f32.mrf.mxu0
  %1181 = vdwg.mxu0
  %vm1182 = vcmask 130048
  %1183 = vst.msk [vmem:[%s7] sm:$0xff] %vm1182, %v1179
  %s1184 = scalar_lea.vmem %s6, 8
  %v1185 = vld [vmem:[%s1184] sm:$0xff]
  %v1187 = vsel %vm1019, %v1101, 0
  %1189 = vmatprep.subr.mxu0 0.0
  %1190 = vmatpush1.msra.mxu0 0.0
  %1191 = vmatprep.subr.mxu0 0.0
  %1192 = vmatpush1.msra.mxu0 0.0
  %1193 = vmatprep.subr.mxu0 0.0
  %1194 = vmatpush1.msra.mxu0 0.0
  %1195 = vmatprep.subr.mxu0 0.0
  %1196 = vmatpush1.msra.mxu0 0.0
  %1197 = vmatprep.subr.mxu0 0.0
  %1198 = vmatpush1.msra.mxu0 0.0
  %1199 = vmatprep.subr.mxu0 0.0
  %1200 = vmatpush1.msra.mxu0 0.0
  %1201 = vmatprep.subr.mxu0 0.0
  %1202 = vmatpush1.msra.mxu0 0.0
  %1203 = vmatprep.subr.mxu0 0.0
  %1204 = vmatpush1.msra.mxu0 0.0
  %1205 = vmatprep.subr.mxu0 0.0
  %1206 = vmatpush1.msra.mxu0 0.0
  %1207 = vmatprep.subr.mxu0 0.0
  %1208 = vmatpush1.msra.mxu0 0.0
  %1209 = vmatprep.subr.mxu0 0.0
  %1210 = vmatpush1.msra.mxu0 0.0
  %1211 = vmatprep.subr.mxu0 0.0
  %1212 = vmatpush1.msra.mxu0 0.0
  %1213 = vmatprep.subr.mxu0 0.0
  %1214 = vmatpush1.msra.mxu0 0.0
  %1215 = vmatprep.subr.mxu0 0.0
  %1216 = vmatpush1.msra.mxu0 0.0
  %1217 = vmatprep.subr.mxu0 0.0
  %1218 = vmatpush1.msra.mxu0 0.0
  %1219 = vmatprep.subr.mxu0 0.0
  %1220 = vmatpush1.msra.mxu0 %v1185
  %1221 = vmatprep.subr.mxu0 0.0
  %1222 = vmatpush2.msra.mxu0 0.0
  %1223 = vmatprep.subr.mxu0 0.0
  %1224 = vmatpush2.msra.mxu0 0.0
  %1225 = vmatprep.subr.mxu0 0.0
  %1226 = vmatpush2.msra.mxu0 0.0
  %1227 = vmatprep.subr.mxu0 0.0
  %1228 = vmatpush2.msra.mxu0 0.0
  %1229 = vmatprep.subr.mxu0 0.0
  %1230 = vmatpush2.msra.mxu0 0.0
  %1231 = vmatprep.subr.mxu0 0.0
  %1232 = vmatpush2.msra.mxu0 0.0
  %1233 = vmatprep.subr.mxu0 0.0
  %1234 = vmatpush2.msra.mxu0 0.0
  %1235 = vmatprep.subr.mxu0 0.0
  %1236 = vmatpush2.msra.mxu0 0.0
  %1237 = vmatprep.subr.mxu0 0.0
  %1238 = vmatpush2.msra.mxu0 0.0
  %1239 = vmatprep.subr.mxu0 0.0
  %1240 = vmatpush2.msra.mxu0 0.0
  %1241 = vmatprep.subr.mxu0 0.0
  %1242 = vmatpush2.msra.mxu0 0.0
  %1243 = vmatprep.subr.mxu0 0.0
  %1244 = vmatpush2.msra.mxu0 0.0
  %1245 = vmatprep.subr.mxu0 0.0
  %1246 = vmatpush2.msra.mxu0 0.0
  %1247 = vmatprep.subr.mxu0 0.0
  %1248 = vmatpush2.msra.mxu0 0.0
  %1249 = vmatprep.subr.mxu0 0.0
  %1250 = vmatpush2.msra.mxu0 0.0
  %1251 = vmatprep.subr.mxu0 0.0
  %1252 = vmatpush2.msra.mxu0 0.0
  %1253 = vmatprep.mubr.f32.mxu0 0.0
  %1254 = vmatmul.mubr.f32.gmra.mxu0 %v1187
  %v1255 = vpop.f32.mrf.mxu0
  %v1256 = vadd.f32 0.0, %v1255
  %v1257 = vpop.f32.mrf.mxu0
  %1258 = vdwg.mxu0
  %1260 = vrot.lane.b32.xlu0 %v1256, 16
  %v1261 = vpop.permute.xlu0 %1260
  %vm1263 = vcmask 261248
  %1264 = vst.msk [vmem:[%s7] sm:$0xff] %vm1263, %v1261
  %s1265 = scalar_lea.vmem %s6, 16
  %v1266 = vld [vmem:[%s1265] sm:$0xff]
  %v1268 = vsel %vm1019, %v1102, 0
  %1270 = vmatprep.subr.mxu0 0.0
  %1271 = vmatpush1.msra.mxu0 0.0
  %1272 = vmatprep.subr.mxu0 0.0
  %1273 = vmatpush1.msra.mxu0 0.0
  %1274 = vmatprep.subr.mxu0 0.0
  %1275 = vmatpush1.msra.mxu0 0.0
  %1276 = vmatprep.subr.mxu0 0.0
  %1277 = vmatpush1.msra.mxu0 0.0
  %1278 = vmatprep.subr.mxu0 0.0
  %1279 = vmatpush1.msra.mxu0 0.0
  %1280 = vmatprep.subr.mxu0 0.0
  %1281 = vmatpush1.msra.mxu0 0.0
  %1282 = vmatprep.subr.mxu0 0.0
  %1283 = vmatpush1.msra.mxu0 0.0
  %1284 = vmatprep.subr.mxu0 0.0
  %1285 = vmatpush1.msra.mxu0 0.0
  %1286 = vmatprep.subr.mxu0 0.0
  %1287 = vmatpush1.msra.mxu0 0.0
  %1288 = vmatprep.subr.mxu0 0.0
  %1289 = vmatpush1.msra.mxu0 0.0
  %1290 = vmatprep.subr.mxu0 0.0
  %1291 = vmatpush1.msra.mxu0 0.0
  %1292 = vmatprep.subr.mxu0 0.0
  %1293 = vmatpush1.msra.mxu0 0.0
  %1294 = vmatprep.subr.mxu0 0.0
  %1295 = vmatpush1.msra.mxu0 0.0
  %1296 = vmatprep.subr.mxu0 0.0
  %1297 = vmatpush1.msra.mxu0 0.0
  %1298 = vmatprep.subr.mxu0 0.0
  %1299 = vmatpush1.msra.mxu0 0.0
  %1300 = vmatprep.subr.mxu0 0.0
  %1301 = vmatpush1.msra.mxu0 %v1266
  %1302 = vmatprep.subr.mxu0 0.0
  %1303 = vmatpush2.msra.mxu0 0.0
  %1304 = vmatprep.subr.mxu0 0.0
  %1305 = vmatpush2.msra.mxu0 0.0
  %1306 = vmatprep.subr.mxu0 0.0
  %1307 = vmatpush2.msra.mxu0 0.0
  %1308 = vmatprep.subr.mxu0 0.0
  %1309 = vmatpush2.msra.mxu0 0.0
  %1310 = vmatprep.subr.mxu0 0.0
  %1311 = vmatpush2.msra.mxu0 0.0
  %1312 = vmatprep.subr.mxu0 0.0
  %1313 = vmatpush2.msra.mxu0 0.0
  %1314 = vmatprep.subr.mxu0 0.0
  %1315 = vmatpush2.msra.mxu0 0.0
  %1316 = vmatprep.subr.mxu0 0.0
  %1317 = vmatpush2.msra.mxu0 0.0
  %1318 = vmatprep.subr.mxu0 0.0
  %1319 = vmatpush2.msra.mxu0 0.0
  %1320 = vmatprep.subr.mxu0 0.0
  %1321 = vmatpush2.msra.mxu0 0.0
  %1322 = vmatprep.subr.mxu0 0.0
  %1323 = vmatpush2.msra.mxu0 0.0
  %1324 = vmatprep.subr.mxu0 0.0
  %1325 = vmatpush2.msra.mxu0 0.0
  %1326 = vmatprep.subr.mxu0 0.0
  %1327 = vmatpush2.msra.mxu0 0.0
  %1328 = vmatprep.subr.mxu0 0.0
  %1329 = vmatpush2.msra.mxu0 0.0
  %1330 = vmatprep.subr.mxu0 0.0
  %1331 = vmatpush2.msra.mxu0 0.0
  %1332 = vmatprep.subr.mxu0 0.0
  %1333 = vmatpush2.msra.mxu0 0.0
  %1334 = vmatprep.mubr.f32.mxu0 0.0
  %1335 = vmatmul.mubr.f32.gmra.mxu0 %v1268
  %v1336 = vpop.f32.mrf.mxu0
  %v1337 = vadd.f32 0.0, %v1336
  %v1338 = vpop.f32.mrf.mxu0
  %1339 = vdwg.mxu0
  %1341 = vrot.lane.b32.xlu0 %v1337, 32
  %v1342 = vpop.permute.xlu0 %1341
  %vm1344 = vcmask 392448
  %1345 = vst.msk [vmem:[%s7] sm:$0xff] %vm1344, %v1342
  %s1346 = scalar_lea.vmem %s6, 24
  %v1347 = vld [vmem:[%s1346] sm:$0xff]
  %v1349 = vsel %vm1019, %v1103, 0
  %1351 = vmatprep.subr.mxu0 0.0
  %1352 = vmatpush1.msra.mxu0 0.0
  %1353 = vmatprep.subr.mxu0 0.0
  %1354 = vmatpush1.msra.mxu0 0.0
  %1355 = vmatprep.subr.mxu0 0.0
  %1356 = vmatpush1.msra.mxu0 0.0
  %1357 = vmatprep.subr.mxu0 0.0
  %1358 = vmatpush1.msra.mxu0 0.0
  %1359 = vmatprep.subr.mxu0 0.0
  %1360 = vmatpush1.msra.mxu0 0.0
  %1361 = vmatprep.subr.mxu0 0.0
  %1362 = vmatpush1.msra.mxu0 0.0
  %1363 = vmatprep.subr.mxu0 0.0
  %1364 = vmatpush1.msra.mxu0 0.0
  %1365 = vmatprep.subr.mxu0 0.0
  %1366 = vmatpush1.msra.mxu0 0.0
  %1367 = vmatprep.subr.mxu0 0.0
  %1368 = vmatpush1.msra.mxu0 0.0
  %1369 = vmatprep.subr.mxu0 0.0
  %1370 = vmatpush1.msra.mxu0 0.0
  %1371 = vmatprep.subr.mxu0 0.0
  %1372 = vmatpush1.msra.mxu0 0.0
  %1373 = vmatprep.subr.mxu0 0.0
  %1374 = vmatpush1.msra.mxu0 0.0
  %1375 = vmatprep.subr.mxu0 0.0
  %1376 = vmatpush1.msra.mxu0 0.0
  %1377 = vmatprep.subr.mxu0 0.0
  %1378 = vmatpush1.msra.mxu0 0.0
  %1379 = vmatprep.subr.mxu0 0.0
  %1380 = vmatpush1.msra.mxu0 0.0
  %1381 = vmatprep.subr.mxu0 0.0
  %1382 = vmatpush1.msra.mxu0 %v1347
  %1383 = vmatprep.subr.mxu0 0.0
  %1384 = vmatpush2.msra.mxu0 0.0
  %1385 = vmatprep.subr.mxu0 0.0
  %1386 = vmatpush2.msra.mxu0 0.0
  %1387 = vmatprep.subr.mxu0 0.0
  %1388 = vmatpush2.msra.mxu0 0.0
  %1389 = vmatprep.subr.mxu0 0.0
  %1390 = vmatpush2.msra.mxu0 0.0
  %1391 = vmatprep.subr.mxu0 0.0
  %1392 = vmatpush2.msra.mxu0 0.0
  %1393 = vmatprep.subr.mxu0 0.0
  %1394 = vmatpush2.msra.mxu0 0.0
  %1395 = vmatprep.subr.mxu0 0.0
  %1396 = vmatpush2.msra.mxu0 0.0
  %1397 = vmatprep.subr.mxu0 0.0
  %1398 = vmatpush2.msra.mxu0 0.0
  %1399 = vmatprep.subr.mxu0 0.0
  %1400 = vmatpush2.msra.mxu0 0.0
  %1401 = vmatprep.subr.mxu0 0.0
  %1402 = vmatpush2.msra.mxu0 0.0
  %1403 = vmatprep.subr.mxu0 0.0
  %1404 = vmatpush2.msra.mxu0 0.0
  %1405 = vmatprep.subr.mxu0 0.0
  %1406 = vmatpush2.msra.mxu0 0.0
  %1407 = vmatprep.subr.mxu0 0.0
  %1408 = vmatpush2.msra.mxu0 0.0
  %1409 = vmatprep.subr.mxu0 0.0
  %1410 = vmatpush2.msra.mxu0 0.0
  %1411 = vmatprep.subr.mxu0 0.0
  %1412 = vmatpush2.msra.mxu0 0.0
  %1413 = vmatprep.subr.mxu0 0.0
  %1414 = vmatpush2.msra.mxu0 0.0
  %1415 = vmatprep.mubr.f32.mxu0 0.0
  %1416 = vmatmul.mubr.f32.gmra.mxu0 %v1349
  %v1417 = vpop.f32.mrf.mxu0
  %v1418 = vadd.f32 0.0, %v1417
  %v1419 = vpop.f32.mrf.mxu0
  %1420 = vdwg.mxu0
  %1422 = vrot.lane.b32.xlu0 %v1418, 48
  %v1423 = vpop.permute.xlu0 %1422
  %vm1425 = vcmask 523648
  %1426 = vst.msk [vmem:[%s7] sm:$0xff] %vm1425, %v1423
  %s1427 = scalar_lea.vmem %s6, 32
  %v1428 = vld [vmem:[%s1427] sm:$0xff]
  %v1430 = vsel %vm1019, %v1104, 0
  %1432 = vmatprep.subr.mxu0 0.0
  %1433 = vmatpush1.msra.mxu0 0.0
  %1434 = vmatprep.subr.mxu0 0.0
  %1435 = vmatpush1.msra.mxu0 0.0
  %1436 = vmatprep.subr.mxu0 0.0
  %1437 = vmatpush1.msra.mxu0 0.0
  %1438 = vmatprep.subr.mxu0 0.0
  %1439 = vmatpush1.msra.mxu0 0.0
  %1440 = vmatprep.subr.mxu0 0.0
  %1441 = vmatpush1.msra.mxu0 0.0
  %1442 = vmatprep.subr.mxu0 0.0
  %1443 = vmatpush1.msra.mxu0 0.0
  %1444 = vmatprep.subr.mxu0 0.0
  %1445 = vmatpush1.msra.mxu0 0.0
  %1446 = vmatprep.subr.mxu0 0.0
  %1447 = vmatpush1.msra.mxu0 0.0
  %1448 = vmatprep.subr.mxu0 0.0
  %1449 = vmatpush1.msra.mxu0 0.0
  %1450 = vmatprep.subr.mxu0 0.0
  %1451 = vmatpush1.msra.mxu0 0.0
  %1452 = vmatprep.subr.mxu0 0.0
  %1453 = vmatpush1.msra.mxu0 0.0
  %1454 = vmatprep.subr.mxu0 0.0
  %1455 = vmatpush1.msra.mxu0 0.0
  %1456 = vmatprep.subr.mxu0 0.0
  %1457 = vmatpush1.msra.mxu0 0.0
  %1458 = vmatprep.subr.mxu0 0.0
  %1459 = vmatpush1.msra.mxu0 0.0
  %1460 = vmatprep.subr.mxu0 0.0
  %1461 = vmatpush1.msra.mxu0 0.0
  %1462 = vmatprep.subr.mxu0 0.0
  %1463 = vmatpush1.msra.mxu0 %v1428
  %1464 = vmatprep.subr.mxu0 0.0
  %1465 = vmatpush2.msra.mxu0 0.0
  %1466 = vmatprep.subr.mxu0 0.0
  %1467 = vmatpush2.msra.mxu0 0.0
  %1468 = vmatprep.subr.mxu0 0.0
  %1469 = vmatpush2.msra.mxu0 0.0
  %1470 = vmatprep.subr.mxu0 0.0
  %1471 = vmatpush2.msra.mxu0 0.0
  %1472 = vmatprep.subr.mxu0 0.0
  %1473 = vmatpush2.msra.mxu0 0.0
  %1474 = vmatprep.subr.mxu0 0.0
  %1475 = vmatpush2.msra.mxu0 0.0
  %1476 = vmatprep.subr.mxu0 0.0
  %1477 = vmatpush2.msra.mxu0 0.0
  %1478 = vmatprep.subr.mxu0 0.0
  %1479 = vmatpush2.msra.mxu0 0.0
  %1480 = vmatprep.subr.mxu0 0.0
  %1481 = vmatpush2.msra.mxu0 0.0
  %1482 = vmatprep.subr.mxu0 0.0
  %1483 = vmatpush2.msra.mxu0 0.0
  %1484 = vmatprep.subr.mxu0 0.0
  %1485 = vmatpush2.msra.mxu0 0.0
  %1486 = vmatprep.subr.mxu0 0.0
  %1487 = vmatpush2.msra.mxu0 0.0
  %1488 = vmatprep.subr.mxu0 0.0
  %1489 = vmatpush2.msra.mxu0 0.0
  %1490 = vmatprep.subr.mxu0 0.0
  %1491 = vmatpush2.msra.mxu0 0.0
  %1492 = vmatprep.subr.mxu0 0.0
  %1493 = vmatpush2.msra.mxu0 0.0
  %1494 = vmatprep.subr.mxu0 0.0
  %1495 = vmatpush2.msra.mxu0 0.0
  %1496 = vmatprep.mubr.f32.mxu0 0.0
  %1497 = vmatmul.mubr.f32.gmra.mxu0 %v1430
  %v1498 = vpop.f32.mrf.mxu0
  %v1499 = vadd.f32 0.0, %v1498
  %v1500 = vpop.f32.mrf.mxu0
  %1501 = vdwg.mxu0
  %1503 = vrot.lane.b32.xlu0 %v1499, 64
  %v1504 = vpop.permute.xlu0 %1503
  %vm1506 = vcmask 654848
  %1507 = vst.msk [vmem:[%s7] sm:$0xff] %vm1506, %v1504
  %s1508 = scalar_lea.vmem %s6, 40
  %v1509 = vld [vmem:[%s1508] sm:$0xff]
  %v1511 = vsel %vm1019, %v1105, 0
  %1513 = vmatprep.subr.mxu0 0.0
  %1514 = vmatpush1.msra.mxu0 0.0
  %1515 = vmatprep.subr.mxu0 0.0
  %1516 = vmatpush1.msra.mxu0 0.0
  %1517 = vmatprep.subr.mxu0 0.0
  %1518 = vmatpush1.msra.mxu0 0.0
  %1519 = vmatprep.subr.mxu0 0.0
  %1520 = vmatpush1.msra.mxu0 0.0
  %1521 = vmatprep.subr.mxu0 0.0
  %1522 = vmatpush1.msra.mxu0 0.0
  %1523 = vmatprep.subr.mxu0 0.0
  %1524 = vmatpush1.msra.mxu0 0.0
  %1525 = vmatprep.subr.mxu0 0.0
  %1526 = vmatpush1.msra.mxu0 0.0
  %1527 = vmatprep.subr.mxu0 0.0
  %1528 = vmatpush1.msra.mxu0 0.0
  %1529 = vmatprep.subr.mxu0 0.0
  %1530 = vmatpush1.msra.mxu0 0.0
  %1531 = vmatprep.subr.mxu0 0.0
  %1532 = vmatpush1.msra.mxu0 0.0
  %1533 = vmatprep.subr.mxu0 0.0
  %1534 = vmatpush1.msra.mxu0 0.0
  %1535 = vmatprep.subr.mxu0 0.0
  %1536 = vmatpush1.msra.mxu0 0.0
  %1537 = vmatprep.subr.mxu0 0.0
  %1538 = vmatpush1.msra.mxu0 0.0
  %1539 = vmatprep.subr.mxu0 0.0
  %1540 = vmatpush1.msra.mxu0 0.0
  %1541 = vmatprep.subr.mxu0 0.0
  %1542 = vmatpush1.msra.mxu0 0.0
  %1543 = vmatprep.subr.mxu0 0.0
  %1544 = vmatpush1.msra.mxu0 %v1509
  %1545 = vmatprep.subr.mxu0 0.0
  %1546 = vmatpush2.msra.mxu0 0.0
  %1547 = vmatprep.subr.mxu0 0.0
  %1548 = vmatpush2.msra.mxu0 0.0
  %1549 = vmatprep.subr.mxu0 0.0
  %1550 = vmatpush2.msra.mxu0 0.0
  %1551 = vmatprep.subr.mxu0 0.0
  %1552 = vmatpush2.msra.mxu0 0.0
  %1553 = vmatprep.subr.mxu0 0.0
  %1554 = vmatpush2.msra.mxu0 0.0
  %1555 = vmatprep.subr.mxu0 0.0
  %1556 = vmatpush2.msra.mxu0 0.0
  %1557 = vmatprep.subr.mxu0 0.0
  %1558 = vmatpush2.msra.mxu0 0.0
  %1559 = vmatprep.subr.mxu0 0.0
  %1560 = vmatpush2.msra.mxu0 0.0
  %1561 = vmatprep.subr.mxu0 0.0
  %1562 = vmatpush2.msra.mxu0 0.0
  %1563 = vmatprep.subr.mxu0 0.0
  %1564 = vmatpush2.msra.mxu0 0.0
  %1565 = vmatprep.subr.mxu0 0.0
  %1566 = vmatpush2.msra.mxu0 0.0
  %1567 = vmatprep.subr.mxu0 0.0
  %1568 = vmatpush2.msra.mxu0 0.0
  %1569 = vmatprep.subr.mxu0 0.0
  %1570 = vmatpush2.msra.mxu0 0.0
  %1571 = vmatprep.subr.mxu0 0.0
  %1572 = vmatpush2.msra.mxu0 0.0
  %1573 = vmatprep.subr.mxu0 0.0
  %1574 = vmatpush2.msra.mxu0 0.0
  %1575 = vmatprep.subr.mxu0 0.0
  %1576 = vmatpush2.msra.mxu0 0.0
  %1577 = vmatprep.mubr.f32.mxu0 0.0
  %1578 = vmatmul.mubr.f32.gmra.mxu0 %v1511
  %v1579 = vpop.f32.mrf.mxu0
  %v1580 = vadd.f32 0.0, %v1579
  %v1581 = vpop.f32.mrf.mxu0
  %1582 = vdwg.mxu0
  %1584 = vrot.lane.b32.xlu0 %v1580, 80
  %v1585 = vpop.permute.xlu0 %1584
  %vm1587 = vcmask 786048
  %1588 = vst.msk [vmem:[%s7] sm:$0xff] %vm1587, %v1585
  %s1589 = scalar_lea.vmem %s6, 48
  %v1590 = vld [vmem:[%s1589] sm:$0xff]
  %v1592 = vsel %vm1019, %v1106, 0
  %1594 = vmatprep.subr.mxu0 0.0
  %1595 = vmatpush1.msra.mxu0 0.0
  %1596 = vmatprep.subr.mxu0 0.0
  %1597 = vmatpush1.msra.mxu0 0.0
  %1598 = vmatprep.subr.mxu0 0.0
  %1599 = vmatpush1.msra.mxu0 0.0
  %1600 = vmatprep.subr.mxu0 0.0
  %1601 = vmatpush1.msra.mxu0 0.0
  %1602 = vmatprep.subr.mxu0 0.0
  %1603 = vmatpush1.msra.mxu0 0.0
  %1604 = vmatprep.subr.mxu0 0.0
  %1605 = vmatpush1.msra.mxu0 0.0
  %1606 = vmatprep.subr.mxu0 0.0
  %1607 = vmatpush1.msra.mxu0 0.0
  %1608 = vmatprep.subr.mxu0 0.0
  %1609 = vmatpush1.msra.mxu0 0.0
  %1610 = vmatprep.subr.mxu0 0.0
  %1611 = vmatpush1.msra.mxu0 0.0
  %1612 = vmatprep.subr.mxu0 0.0
  %1613 = vmatpush1.msra.mxu0 0.0
  %1614 = vmatprep.subr.mxu0 0.0
  %1615 = vmatpush1.msra.mxu0 0.0
  %1616 = vmatprep.subr.mxu0 0.0
  %1617 = vmatpush1.msra.mxu0 0.0
  %1618 = vmatprep.subr.mxu0 0.0
  %1619 = vmatpush1.msra.mxu0 0.0
  %1620 = vmatprep.subr.mxu0 0.0
  %1621 = vmatpush1.msra.mxu0 0.0
  %1622 = vmatprep.subr.mxu0 0.0
  %1623 = vmatpush1.msra.mxu0 0.0
  %1624 = vmatprep.subr.mxu0 0.0
  %1625 = vmatpush1.msra.mxu0 %v1590
  %1626 = vmatprep.subr.mxu0 0.0
  %1627 = vmatpush2.msra.mxu0 0.0
  %1628 = vmatprep.subr.mxu0 0.0
  %1629 = vmatpush2.msra.mxu0 0.0
  %1630 = vmatprep.subr.mxu0 0.0
  %1631 = vmatpush2.msra.mxu0 0.0
  %1632 = vmatprep.subr.mxu0 0.0
  %1633 = vmatpush2.msra.mxu0 0.0
  %1634 = vmatprep.subr.mxu0 0.0
  %1635 = vmatpush2.msra.mxu0 0.0
  %1636 = vmatprep.subr.mxu0 0.0
  %1637 = vmatpush2.msra.mxu0 0.0
  %1638 = vmatprep.subr.mxu0 0.0
  %1639 = vmatpush2.msra.mxu0 0.0
  %1640 = vmatprep.subr.mxu0 0.0
  %1641 = vmatpush2.msra.mxu0 0.0
  %1642 = vmatprep.subr.mxu0 0.0
  %1643 = vmatpush2.msra.mxu0 0.0
  %1644 = vmatprep.subr.mxu0 0.0
  %1645 = vmatpush2.msra.mxu0 0.0
  %1646 = vmatprep.subr.mxu0 0.0
  %1647 = vmatpush2.msra.mxu0 0.0
  %1648 = vmatprep.subr.mxu0 0.0
  %1649 = vmatpush2.msra.mxu0 0.0
  %1650 = vmatprep.subr.mxu0 0.0
  %1651 = vmatpush2.msra.mxu0 0.0
  %1652 = vmatprep.subr.mxu0 0.0
  %1653 = vmatpush2.msra.mxu0 0.0
  %1654 = vmatprep.subr.mxu0 0.0
  %1655 = vmatpush2.msra.mxu0 0.0
  %1656 = vmatprep.subr.mxu0 0.0
  %1657 = vmatpush2.msra.mxu0 0.0
  %1658 = vmatprep.mubr.f32.mxu0 0.0
  %1659 = vmatmul.mubr.f32.gmra.mxu0 %v1592
  %v1660 = vpop.f32.mrf.mxu0
  %v1661 = vadd.f32 0.0, %v1660
  %v1662 = vpop.f32.mrf.mxu0
  %1663 = vdwg.mxu0
  %1665 = vrot.lane.b32.xlu0 %v1661, 96
  %v1666 = vpop.permute.xlu0 %1665
  %vm1668 = vcmask 917248
  %1669 = vst.msk [vmem:[%s7] sm:$0xff] %vm1668, %v1666
  %s1670 = scalar_lea.vmem %s6, 56
  %v1671 = vld [vmem:[%s1670] sm:$0xff]
  %v1673 = vsel %vm1019, %v1107, 0
  %1675 = vmatprep.subr.mxu0 0.0
  %1676 = vmatpush1.msra.mxu0 0.0
  %1677 = vmatprep.subr.mxu0 0.0
  %1678 = vmatpush1.msra.mxu0 0.0
  %1679 = vmatprep.subr.mxu0 0.0
  %1680 = vmatpush1.msra.mxu0 0.0
  %1681 = vmatprep.subr.mxu0 0.0
  %1682 = vmatpush1.msra.mxu0 0.0
  %1683 = vmatprep.subr.mxu0 0.0
  %1684 = vmatpush1.msra.mxu0 0.0
  %1685 = vmatprep.subr.mxu0 0.0
  %1686 = vmatpush1.msra.mxu0 0.0
  %1687 = vmatprep.subr.mxu0 0.0
  %1688 = vmatpush1.msra.mxu0 0.0
  %1689 = vmatprep.subr.mxu0 0.0
  %1690 = vmatpush1.msra.mxu0 0.0
  %1691 = vmatprep.subr.mxu0 0.0
  %1692 = vmatpush1.msra.mxu0 0.0
  %1693 = vmatprep.subr.mxu0 0.0
  %1694 = vmatpush1.msra.mxu0 0.0
  %1695 = vmatprep.subr.mxu0 0.0
  %1696 = vmatpush1.msra.mxu0 0.0
  %1697 = vmatprep.subr.mxu0 0.0
  %1698 = vmatpush1.msra.mxu0 0.0
  %1699 = vmatprep.subr.mxu0 0.0
  %1700 = vmatpush1.msra.mxu0 0.0
  %1701 = vmatprep.subr.mxu0 0.0
  %1702 = vmatpush1.msra.mxu0 0.0
  %1703 = vmatprep.subr.mxu0 0.0
  %1704 = vmatpush1.msra.mxu0 0.0
  %1705 = vmatprep.subr.mxu0 0.0
  %1706 = vmatpush1.msra.mxu0 %v1671
  %1707 = vmatprep.subr.mxu0 0.0
  %1708 = vmatpush2.msra.mxu0 0.0
  %1709 = vmatprep.subr.mxu0 0.0
  %1710 = vmatpush2.msra.mxu0 0.0
  %1711 = vmatprep.subr.mxu0 0.0
  %1712 = vmatpush2.msra.mxu0 0.0
  %1713 = vmatprep.subr.mxu0 0.0
  %1714 = vmatpush2.msra.mxu0 0.0
  %1715 = vmatprep.subr.mxu0 0.0
  %1716 = vmatpush2.msra.mxu0 0.0
  %1717 = vmatprep.subr.mxu0 0.0
  %1718 = vmatpush2.msra.mxu0 0.0
  %1719 = vmatprep.subr.mxu0 0.0
  %1720 = vmatpush2.msra.mxu0 0.0
  %1721 = vmatprep.subr.mxu0 0.0
  %1722 = vmatpush2.msra.mxu0 0.0
  %1723 = vmatprep.subr.mxu0 0.0
  %1724 = vmatpush2.msra.mxu0 0.0
  %1725 = vmatprep.subr.mxu0 0.0
  %1726 = vmatpush2.msra.mxu0 0.0
  %1727 = vmatprep.subr.mxu0 0.0
  %1728 = vmatpush2.msra.mxu0 0.0
  %1729 = vmatprep.subr.mxu0 0.0
  %1730 = vmatpush2.msra.mxu0 0.0
  %1731 = vmatprep.subr.mxu0 0.0
  %1732 = vmatpush2.msra.mxu0 0.0
  %1733 = vmatprep.subr.mxu0 0.0
  %1734 = vmatpush2.msra.mxu0 0.0
  %1735 = vmatprep.subr.mxu0 0.0
  %1736 = vmatpush2.msra.mxu0 0.0
  %1737 = vmatprep.subr.mxu0 0.0
  %1738 = vmatpush2.msra.mxu0 0.0
  %1739 = vmatprep.mubr.f32.mxu0 0.0
  %1740 = vmatmul.mubr.f32.gmra.mxu0 %v1673
  %v1741 = vpop.f32.mrf.mxu0
  %v1742 = vadd.f32 0.0, %v1741
  %v1743 = vpop.f32.mrf.mxu0
  %1744 = vdwg.mxu0
  %1746 = vrot.lane.b32.xlu0 %v1742, 112
  %v1747 = vpop.permute.xlu0 %1746
  %vm1749 = vcmask 1048448
  %1750 = vst.msk [vmem:[%s7] sm:$0xff] %vm1749, %v1747
  // Predicated region
  $region30: #{video_gandalf_forward.3} parent=0 // pred_check
    _
  $region31: #{video_gandalf_forward.3} parent=0 // pred_check_branch
    %1752 = sbr.rel (0) target = $region33
  $region32: #{video_gandalf_forward.3} parent=0 // pred_region
    _
  $region33: #{video_gandalf_forward.3} parent=0 // pred_fallthru
    _
  // Predicated region
  $region34: #{video_gandalf_forward.3} parent=0 // pred_check
    _
  $region35: #{video_gandalf_forward.3} parent=0 // pred_check_branch
    %1754 = sbr.rel (0) target = $region37
  $region36: #{video_gandalf_forward.3} parent=0 // pred_region
    _
  $region37: #{video_gandalf_forward.3} parent=0 // pred_fallthru
    _

</llo_original>
